<compile_context>
chip_gen: v6e
topology: v6e:2x2x1
jax: 0.10.0
libtpu: 0.0.40
codegen_flags: <defaults>
</compile_context>

<pallas_src>
import jax
import jax.numpy as jnp
import numpy as np
from jax.experimental import pallas as pl
from jax.experimental.pallas import tpu as pltpu


def _pick_row_tile(H, W, C, itemsize=4, budget_bytes=20 * 1024 * 1024):
    """Largest row tile TH that (a) divides H, (b) keeps the lane-packed block width
    TH*W a multiple of 128, (c) fits a conservative per-step VMEM budget, and
    (d) leaves >= 2 row tiles when possible (megacore / v7x)."""

    def vmem_bytes(th):
        row = C * W * itemsize
        blocks = 2 * (2 * th * row + 4 * row)              # x + out blocks (2-deep) + halo
        slabs1 = 3 * (th + 4) * row // 2                   # conv1 bf16 source slabs
        slabs2 = 3 * (th + 2) * row // 2 + (th + 2) * row  # conv2 slabs + t1 (f32)
        acc = 2 * th * row                                 # accumulator / result
        return blocks + slabs1 + slabs2 + acc

    cands = [th for th in (256, 128, 64, 32, 16, 8)
             if H % th == 0 and (th * W) % 128 == 0 and vmem_bytes(th) <= budget_bytes]
    for th in cands:
        if H // th >= 2:
            return th
    if cands:
        return cands[0]
    return H          # single full-height tile: block last dim == H*W, always layout-legal


def _make_kernel(TH, W, C):
    WS1 = (TH + 4) * W     # conv1 source width (2-row halo each side)
    P1 = (TH + 2) * W      # conv1 output width (1-row halo kept for conv2)
    P2 = TH * W            # conv2 / final output width

    def kernel(x_ref, halo_ref, w1_ref, b1_ref, w2_ref, b2_ref, out_ref):
        i = pl.program_id(1)
        nt = pl.num_programs(1)

        x_main = x_ref[0]                 # (C, TH*W)  rows r0 .. r0+TH-1, channel-major
        halo = halo_ref[0, 0]             # (C, 4*W)   rows r0-2, r0-1, r0+TH, r0+TH+1
        # contiguous rows r0-2 .. r0+TH+1 of the (implicitly zero-padded) image
        xf = jnp.concatenate([halo[:, :2 * W], x_main, halo[:, 2 * W:]], axis=1)

        # hoisted per-lane (per-pixel) helpers, shared by both convolutions
        pix = jax.lax.broadcasted_iota(jnp.int32, (1, WS1), 1)
        col = pix % W
        col_first = col == 0              # left neighbour is horizontal zero padding
        col_last = col == W - 1           # right neighbour is horizontal zero padding

        def conv3x3(src, P, w_ref_, b_ref_):
            # src: (C, P + 2*W) activations incl. a 1-row halo at top & bottom.
            # Returns bias + 3x3 conv over the P central pixels as f32 (C, P).
            ws = src.shape[1]
            s0 = src.astype(jnp.bfloat16)                     # MXU operands in bf16
            zl = jnp.zeros((s0.shape[0], 1), jnp.bfloat16)
            # column-shifted source slabs: built once, re-used by all three row taps
            s_l = jnp.where(col_first[:, :ws], 0,
                            jnp.concatenate([zl, s0[:, :-1]], axis=1))
            s_r = jnp.where(col_last[:, :ws], 0,
                            jnp.concatenate([s0[:, 1:], zl], axis=1))
            acc = None
            for kh in range(3):                               # input row r-1, r, r+1
                for kw, s in enumerate((s_l, s0, s_r)):       # input col c-1, c, c+1
                    tap = s[:, kh * W: kh * W + P]            # lane slice, no copy of 9C
                    d = jnp.dot(w_ref_[kh * 3 + kw], tap,
                                preferred_element_type=jnp.float32)
                    acc = d if acc is None else acc + d       # accumulating matmuls
            return acc + b_ref_[...]

        # ---- conv1 (+bias) + ReLU over TH+2 rows (1-row halo kept for conv2) ----
        t1 = jnp.maximum(conv3x3(xf, P1, w1_ref, b1_ref), 0.0)
        # rows falling outside the image act as conv2's zero padding
        top_pad = jnp.logical_and(pix[:, :P1] < W, i == 0)
        bot_pad = jnp.logical_and(pix[:, :P1] >= P1 - W, i == nt - 1)
        t1 = jnp.where(jnp.logical_or(top_pad, bot_pad), 0.0, t1)

        # ---- conv2 (+bias) over the TH output rows, then the residual add ----
        t2 = conv3x3(t1, P2, w2_ref, b2_ref)
        out_ref[0] = (t2 + x_main).astype(out_ref.dtype)

    return kernel


@jax.jit
def residual_block_nobn(x_nchw, w1, b1, w2, b2):
    """x: (N, C, H, W).  w1/w2: (C, C, 3, 3) torch OIHW conv weights.  b1/b2: (C,)."""
    N, C, H, W = x_nchw.shape
    TH = _pick_row_tile(H, W, C, x_nchw.dtype.itemsize)
    nt = H // TH

    # channel-major, pixels on the lane axis -- a free reshape, no transpose pass
    x_flat = x_nchw.reshape(N, C, H * W)

    # 4 halo rows per tile (2 above + 2 below, zeros at the image border),
    # built from direct slices of x -- no full-image pad / gather pass.
    zeros2 = jnp.zeros((N, C, 2, W), x_nchw.dtype)
    tiles = []
    for i in range(nt):
        top = zeros2 if i == 0 else x_nchw[:, :, i * TH - 2:i * TH, :]
        bot = zeros2 if i == nt - 1 else x_nchw[:, :, (i + 1) * TH:(i + 1) * TH + 2, :]
        tiles.append(jnp.concatenate([top, bot], axis=2))
    halo = jnp.stack(tiles, axis=1).reshape(N, nt, C, 4 * W)

    # per-tap weights: (Cout,Cin,kh,kw) -> (kh,kw,Cout,Cin) -> (9, Cout, Cin), bf16
    w1t = jnp.transpose(w1, (2, 3, 0, 1)).reshape(9, C, C).astype(jnp.bfloat16)
    w2t = jnp.transpose(w2, (2, 3, 0, 1)).reshape(9, C, C).astype(jnp.bfloat16)
    b1v = b1.reshape(C, 1).astype(jnp.float32)
    b2v = b2.reshape(C, 1).astype(jnp.float32)

    kernel = _make_kernel(TH, W, C)
    ds = x_nchw.dtype.itemsize
    flops = 2 * 2 * 9 * C * C * N * H * W
    bytes_acc = (ds * (2 * N * C * H * W + N * nt * C * 4 * W)
                 + 2 * (2 * 9 * C * C) + 2 * 4 * C)

    out_flat = pl.pallas_call(
        kernel,
        out_shape=jax.ShapeDtypeStruct((N, C, H * W), x_nchw.dtype),
        grid=(N, nt),
        in_specs=[
            pl.BlockSpec((1, C, TH * W), lambda n, i: (n, 0, i)),        # main rows
            pl.BlockSpec((1, 1, C, 4 * W), lambda n, i: (n, i, 0, 0)),   # halo rows
            pl.BlockSpec((9, C, C), lambda n, i: (0, 0, 0)),             # conv1 taps
            pl.BlockSpec((C, 1), lambda n, i: (0, 0)),                   # conv1 bias
            pl.BlockSpec((9, C, C), lambda n, i: (0, 0, 0)),             # conv2 taps
            pl.BlockSpec((C, 1), lambda n, i: (0, 0)),                   # conv2 bias
        ],
        out_specs=pl.BlockSpec((1, C, TH * W), lambda n, i: (n, 0, i)),
        compiler_params=pltpu.CompilerParams(
            dimension_semantics=("parallel", "parallel"),
            vmem_limit_bytes=32 * 1024 * 1024),
        cost_estimate=pl.CostEstimate(flops=flops, transcendentals=0,
                                      bytes_accessed=bytes_acc),
    )(x_flat, halo, w1t, b1v, w2t, b2v)

    return out_flat.reshape(N, C, H, W)


def reference(x, w1, b1, w2, b2):
    """Pure-JAX reference matching the PyTorch module (verification only)."""
    dn = ("NCHW", "OIHW", "NCHW")
    hp = jax.lax.Precision.HIGHEST

    def conv(v, w, b):
        o = jax.lax.conv_general_dilated(v, w, (1, 1), ((1, 1), (1, 1)),
                                         dimension_numbers=dn, precision=hp)
        return o + b[None, :, None, None]

    t = jax.nn.relu(conv(x, w1, b1))
    return x + conv(t, w2, b2)


if __name__ == "__main__":
    key = jax.random.PRNGKey(0)
    kx, k1, k2, k3, k4 = jax.random.split(key, 5)

    N, C, H, W = 2, 4, 16, 16
    x = jax.random.normal(kx, (N, C, H, W), jnp.float32)

    # synthetic parameters with the module's shapes (nf=C); small scale like init(0.1)
    w1 = 0.1 * jax.random.normal(k1, (C, C, 3, 3), jnp.float32)
    w2 = 0.1 * jax.random.normal(k2, (C, C, 3, 3), jnp.float32)
    b1 = 0.1 * jax.random.normal(k3, (C,), jnp.float32)
    b2 = 0.1 * jax.random.normal(k4, (C,), jnp.float32)

    out = jax.block_until_ready(residual_block_nobn(x, w1, b1, w2, b2))
    assert out.shape == (N, C, H, W)

    ref = reference(x, w1, b1, w2, b2)
    # tolerances account for bf16 MXU operands vs. the f32 HIGHEST-precision reference
    np.testing.assert_allclose(np.asarray(out), np.asarray(ref),
                               rtol=3e-2, atol=2e-2)
    print("KERNEL_OK")
</pallas_src>

<mosaic_0001>
module attributes {stable_mosaic.version = 11 : i64} {
  func.func @kernel(%arg0: i32, %arg1: i32, %arg2: memref<1x4x128xf32, #tpu.memory_space<vmem>>, %arg3: memref<1x1x4x64xf32, #tpu.memory_space<vmem>>, %arg4: memref<9x4x4xbf16, #tpu.memory_space<vmem>>, %arg5: memref<4x1xf32, #tpu.memory_space<vmem>>, %arg6: memref<9x4x4xbf16, #tpu.memory_space<vmem>>, %arg7: memref<4x1xf32, #tpu.memory_space<vmem>>, %arg8: memref<1x4x128xf32, #tpu.memory_space<vmem>>) attributes {dimension_semantics = [#tpu.dimension_semantics<parallel>, #tpu.dimension_semantics<parallel>], iteration_bounds = array<i64: 2, 2>, scalar_prefetch = 0 : i64, scratch_operands = 0 : i64, tpu.core_type = #tpu.core_type<tc>, window_params = [{transform_indices = @transform_0, window_bounds = array<i64: 1, 4, 128>}, {transform_indices = @transform_1, window_bounds = array<i64: 1, 1, 4, 64>}, {pipeline_mode = #tpu.pipeline_mode<synchronous>, transform_indices = @transform_2, window_bounds = array<i64: 9, 4, 4>}, {pipeline_mode = #tpu.pipeline_mode<synchronous>, transform_indices = @transform_3, window_bounds = array<i64: 4, 1>}, {pipeline_mode = #tpu.pipeline_mode<synchronous>, transform_indices = @transform_4, window_bounds = array<i64: 9, 4, 4>}, {pipeline_mode = #tpu.pipeline_mode<synchronous>, transform_indices = @transform_5, window_bounds = array<i64: 4, 1>}, {transform_indices = @transform_6, window_bounds = array<i64: 1, 4, 128>}]} {
    %c0 = arith.constant 0 : index
    %c0_0 = arith.constant 0 : index
    %c0_1 = arith.constant 0 : index
    %0 = vector.load %arg2[%c0, %c0_0, %c0_1] : memref<1x4x128xf32, #tpu.memory_space<vmem>>, vector<1x4x128xf32>
    %1 = vector.shape_cast %0 : vector<1x4x128xf32> to vector<4x128xf32>
    %c0_2 = arith.constant 0 : index
    %c0_3 = arith.constant 0 : index
    %c0_4 = arith.constant 0 : index
    %c0_5 = arith.constant 0 : index
    %2 = vector.load %arg3[%c0_2, %c0_3, %c0_4, %c0_5] : memref<1x1x4x64xf32, #tpu.memory_space<vmem>>, vector<1x1x4x64xf32>
    %3 = vector.shape_cast %2 : vector<1x1x4x64xf32> to vector<4x64xf32>
    %4 = vector.extract_strided_slice %3 {offsets = [0, 0], sizes = [4, 32], strides = [1, 1]} : vector<4x64xf32> to vector<4x32xf32>
    %5 = vector.extract_strided_slice %3 {offsets = [0, 32], sizes = [4, 32], strides = [1, 1]} : vector<4x64xf32> to vector<4x32xf32>
    %6 = tpu.concatenate %4, %1, %5 in 1 : vector<4x32xf32>, vector<4x128xf32>, vector<4x32xf32> -> vector<4x192xf32>
    %7 = tpu.iota {dimensions = array<i32: 1>} : vector<1x192xi32>
    %c16_i32 = arith.constant 16 : i32
    %c0_i32 = arith.constant 0 : i32
    %8 = arith.cmpi eq, %c16_i32, %c0_i32 : i32
    %c1_i32 = arith.constant 1 : i32
    %9 = arith.select %8, %c1_i32, %c16_i32 : i32
    %10 = vector.broadcast %9 : i32 to vector<1x192xi32>
    %11 = arith.remsi %7, %10 : vector<1x192xi32>
    %c0_i32_6 = arith.constant 0 : i32
    %12 = vector.broadcast %c0_i32_6 : i32 to vector<1x192xi32>
    %13 = arith.cmpi ne, %11, %12 : vector<1x192xi32>
    %c0_i32_7 = arith.constant 0 : i32
    %14 = vector.broadcast %c0_i32_7 : i32 to vector<1x192xi32>
    %15 = arith.cmpi slt, %11, %14 : vector<1x192xi32>
    %c0_i32_8 = arith.constant 0 : i32
    %16 = arith.cmpi slt, %9, %c0_i32_8 : i32
    %17 = vector.broadcast %16 : i1 to vector<1x192xi1>
    %18 = vector.broadcast %17 : vector<1x192xi1> to vector<1x192xi1>
    %19 = arith.xori %15, %18 : vector<1x192xi1>
    %20 = arith.andi %19, %13 : vector<1x192xi1>
    %21 = vector.broadcast %9 : i32 to vector<1x192xi32>
    %22 = arith.addi %11, %21 : vector<1x192xi32>
    %23 = arith.select %20, %22, %11 : vector<1x192xi1>, vector<1x192xi32>
    %c0_i32_9 = arith.constant 0 : i32
    %24 = vector.broadcast %c0_i32_9 : i32 to vector<1x192xi32>
    %25 = arith.cmpi eq, %23, %24 : vector<1x192xi32>
    %c15_i32 = arith.constant 15 : i32
    %26 = vector.broadcast %c15_i32 : i32 to vector<1x192xi32>
    %27 = arith.cmpi eq, %23, %26 : vector<1x192xi32>
    %28 = arith.truncf %6 : vector<4x192xf32> to vector<4x192xbf16>
    %cst = arith.constant 0.000000e+00 : bf16
    %29 = vector.broadcast %cst : bf16 to vector<4x1xbf16>
    %30 = vector.extract_strided_slice %28 {offsets = [0, 0], sizes = [4, 191], strides = [1, 1]} : vector<4x192xbf16> to vector<4x191xbf16>
    %31 = tpu.concatenate %29, %30 in 1 : vector<4x1xbf16>, vector<4x191xbf16> -> vector<4x192xbf16>
    %c0_i32_10 = arith.constant 0 : i32
    %32 = arith.sitofp %c0_i32_10 : i32 to bf16
    %33 = vector.shape_cast %25 : vector<1x192xi1> to vector<1x192xi1>
    %34 = vector.broadcast %33 : vector<1x192xi1> to vector<4x192xi1>
    %35 = vector.broadcast %32 : bf16 to vector<4x192xbf16>
    %36 = arith.select %34, %35, %31 : vector<4x192xi1>, vector<4x192xbf16>
    %37 = vector.extract_strided_slice %28 {offsets = [0, 1], sizes = [4, 191], strides = [1, 1]} : vector<4x192xbf16> to vector<4x191xbf16>
    %38 = tpu.concatenate %37, %29 in 1 : vector<4x191xbf16>, vector<4x1xbf16> -> vector<4x192xbf16>
    %c0_i32_11 = arith.constant 0 : i32
    %39 = arith.sitofp %c0_i32_11 : i32 to bf16
    %40 = vector.shape_cast %27 : vector<1x192xi1> to vector<1x192xi1>
    %41 = vector.broadcast %40 : vector<1x192xi1> to vector<4x192xi1>
    %42 = vector.broadcast %39 : bf16 to vector<4x192xbf16>
    %43 = arith.select %41, %42, %38 : vector<4x192xi1>, vector<4x192xbf16>
    %44 = vector.extract_strided_slice %36 {offsets = [0, 0], sizes = [4, 160], strides = [1, 1]} : vector<4x192xbf16> to vector<4x160xbf16>
    %c0_12 = arith.constant 0 : index
    %c0_13 = arith.constant 0 : index
    %c0_14 = arith.constant 0 : index
    %45 = vector.load %arg4[%c0_12, %c0_13, %c0_14] : memref<9x4x4xbf16, #tpu.memory_space<vmem>>, vector<1x4x4xbf16>
    %46 = vector.shape_cast %45 : vector<1x4x4xbf16> to vector<4x4xbf16>
    %cst_15 = arith.constant dense<0.000000e+00> : vector<4x160xf32>
    %47 = tpu.matmul %46, %44, %cst_15 {dimension_numbers = #tpu.dot_dimension_numbers<[1], [0], [0], [1], [0, 0, 1, 1], [], []>} : vector<4x4xbf16>, vector<4x160xbf16>, vector<4x160xf32> -> vector<4x160xf32>
    %48 = vector.extract_strided_slice %28 {offsets = [0, 0], sizes = [4, 160], strides = [1, 1]} : vector<4x192xbf16> to vector<4x160xbf16>
    %c1 = arith.constant 1 : index
    %c0_16 = arith.constant 0 : index
    %c0_17 = arith.constant 0 : index
    %49 = vector.load %arg4[%c1, %c0_16, %c0_17] : memref<9x4x4xbf16, #tpu.memory_space<vmem>>, vector<1x4x4xbf16>
    %50 = vector.shape_cast %49 : vector<1x4x4xbf16> to vector<4x4xbf16>
    %cst_18 = arith.constant dense<0.000000e+00> : vector<4x160xf32>
    %51 = tpu.matmul %50, %48, %cst_18 {dimension_numbers = #tpu.dot_dimension_numbers<[1], [0], [0], [1], [0, 0, 1, 1], [], []>} : vector<4x4xbf16>, vector<4x160xbf16>, vector<4x160xf32> -> vector<4x160xf32>
    %52 = arith.addf %47, %51 : vector<4x160xf32>
    %53 = vector.extract_strided_slice %43 {offsets = [0, 0], sizes = [4, 160], strides = [1, 1]} : vector<4x192xbf16> to vector<4x160xbf16>
    %c2 = arith.constant 2 : index
    %c0_19 = arith.constant 0 : index
    %c0_20 = arith.constant 0 : index
    %54 = vector.load %arg4[%c2, %c0_19, %c0_20] : memref<9x4x4xbf16, #tpu.memory_space<vmem>>, vector<1x4x4xbf16>
    %55 = vector.shape_cast %54 : vector<1x4x4xbf16> to vector<4x4xbf16>
    %cst_21 = arith.constant dense<0.000000e+00> : vector<4x160xf32>
    %56 = tpu.matmul %55, %53, %cst_21 {dimension_numbers = #tpu.dot_dimension_numbers<[1], [0], [0], [1], [0, 0, 1, 1], [], []>} : vector<4x4xbf16>, vector<4x160xbf16>, vector<4x160xf32> -> vector<4x160xf32>
    %57 = arith.addf %52, %56 : vector<4x160xf32>
    %58 = vector.extract_strided_slice %36 {offsets = [0, 16], sizes = [4, 160], strides = [1, 1]} : vector<4x192xbf16> to vector<4x160xbf16>
    %c3 = arith.constant 3 : index
    %c0_22 = arith.constant 0 : index
    %c0_23 = arith.constant 0 : index
    %59 = vector.load %arg4[%c3, %c0_22, %c0_23] : memref<9x4x4xbf16, #tpu.memory_space<vmem>>, vector<1x4x4xbf16>
    %60 = vector.shape_cast %59 : vector<1x4x4xbf16> to vector<4x4xbf16>
    %cst_24 = arith.constant dense<0.000000e+00> : vector<4x160xf32>
    %61 = tpu.matmul %60, %58, %cst_24 {dimension_numbers = #tpu.dot_dimension_numbers<[1], [0], [0], [1], [0, 0, 1, 1], [], []>} : vector<4x4xbf16>, vector<4x160xbf16>, vector<4x160xf32> -> vector<4x160xf32>
    %62 = arith.addf %57, %61 : vector<4x160xf32>
    %63 = vector.extract_strided_slice %28 {offsets = [0, 16], sizes = [4, 160], strides = [1, 1]} : vector<4x192xbf16> to vector<4x160xbf16>
    %c4 = arith.constant 4 : index
    %c0_25 = arith.constant 0 : index
    %c0_26 = arith.constant 0 : index
    %64 = vector.load %arg4[%c4, %c0_25, %c0_26] : memref<9x4x4xbf16, #tpu.memory_space<vmem>>, vector<1x4x4xbf16>
    %65 = vector.shape_cast %64 : vector<1x4x4xbf16> to vector<4x4xbf16>
    %cst_27 = arith.constant dense<0.000000e+00> : vector<4x160xf32>
    %66 = tpu.matmul %65, %63, %cst_27 {dimension_numbers = #tpu.dot_dimension_numbers<[1], [0], [0], [1], [0, 0, 1, 1], [], []>} : vector<4x4xbf16>, vector<4x160xbf16>, vector<4x160xf32> -> vector<4x160xf32>
    %67 = arith.addf %62, %66 : vector<4x160xf32>
    %68 = vector.extract_strided_slice %43 {offsets = [0, 16], sizes = [4, 160], strides = [1, 1]} : vector<4x192xbf16> to vector<4x160xbf16>
    %c5 = arith.constant 5 : index
    %c0_28 = arith.constant 0 : index
    %c0_29 = arith.constant 0 : index
    %69 = vector.load %arg4[%c5, %c0_28, %c0_29] : memref<9x4x4xbf16, #tpu.memory_space<vmem>>, vector<1x4x4xbf16>
    %70 = vector.shape_cast %69 : vector<1x4x4xbf16> to vector<4x4xbf16>
    %cst_30 = arith.constant dense<0.000000e+00> : vector<4x160xf32>
    %71 = tpu.matmul %70, %68, %cst_30 {dimension_numbers = #tpu.dot_dimension_numbers<[1], [0], [0], [1], [0, 0, 1, 1], [], []>} : vector<4x4xbf16>, vector<4x160xbf16>, vector<4x160xf32> -> vector<4x160xf32>
    %72 = arith.addf %67, %71 : vector<4x160xf32>
    %73 = vector.extract_strided_slice %36 {offsets = [0, 32], sizes = [4, 160], strides = [1, 1]} : vector<4x192xbf16> to vector<4x160xbf16>
    %c6 = arith.constant 6 : index
    %c0_31 = arith.constant 0 : index
    %c0_32 = arith.constant 0 : index
    %74 = vector.load %arg4[%c6, %c0_31, %c0_32] : memref<9x4x4xbf16, #tpu.memory_space<vmem>>, vector<1x4x4xbf16>
    %75 = vector.shape_cast %74 : vector<1x4x4xbf16> to vector<4x4xbf16>
    %cst_33 = arith.constant dense<0.000000e+00> : vector<4x160xf32>
    %76 = tpu.matmul %75, %73, %cst_33 {dimension_numbers = #tpu.dot_dimension_numbers<[1], [0], [0], [1], [0, 0, 1, 1], [], []>} : vector<4x4xbf16>, vector<4x160xbf16>, vector<4x160xf32> -> vector<4x160xf32>
    %77 = arith.addf %72, %76 : vector<4x160xf32>
    %78 = vector.extract_strided_slice %28 {offsets = [0, 32], sizes = [4, 160], strides = [1, 1]} : vector<4x192xbf16> to vector<4x160xbf16>
    %c7 = arith.constant 7 : index
    %c0_34 = arith.constant 0 : index
    %c0_35 = arith.constant 0 : index
    %79 = vector.load %arg4[%c7, %c0_34, %c0_35] : memref<9x4x4xbf16, #tpu.memory_space<vmem>>, vector<1x4x4xbf16>
    %80 = vector.shape_cast %79 : vector<1x4x4xbf16> to vector<4x4xbf16>
    %cst_36 = arith.constant dense<0.000000e+00> : vector<4x160xf32>
    %81 = tpu.matmul %80, %78, %cst_36 {dimension_numbers = #tpu.dot_dimension_numbers<[1], [0], [0], [1], [0, 0, 1, 1], [], []>} : vector<4x4xbf16>, vector<4x160xbf16>, vector<4x160xf32> -> vector<4x160xf32>
    %82 = arith.addf %77, %81 : vector<4x160xf32>
    %83 = vector.extract_strided_slice %43 {offsets = [0, 32], sizes = [4, 160], strides = [1, 1]} : vector<4x192xbf16> to vector<4x160xbf16>
    %c8 = arith.constant 8 : index
    %c0_37 = arith.constant 0 : index
    %c0_38 = arith.constant 0 : index
    %84 = vector.load %arg4[%c8, %c0_37, %c0_38] : memref<9x4x4xbf16, #tpu.memory_space<vmem>>, vector<1x4x4xbf16>
    %85 = vector.shape_cast %84 : vector<1x4x4xbf16> to vector<4x4xbf16>
    %cst_39 = arith.constant dense<0.000000e+00> : vector<4x160xf32>
    %86 = tpu.matmul %85, %83, %cst_39 {dimension_numbers = #tpu.dot_dimension_numbers<[1], [0], [0], [1], [0, 0, 1, 1], [], []>} : vector<4x4xbf16>, vector<4x160xbf16>, vector<4x160xf32> -> vector<4x160xf32>
    %87 = arith.addf %82, %86 : vector<4x160xf32>
    %c0_40 = arith.constant 0 : index
    %c0_41 = arith.constant 0 : index
    %88 = vector.load %arg5[%c0_40, %c0_41] : memref<4x1xf32, #tpu.memory_space<vmem>>, vector<4x1xf32>
    %89 = vector.broadcast %88 : vector<4x1xf32> to vector<4x160xf32>
    %90 = arith.addf %87, %89 : vector<4x160xf32>
    %cst_42 = arith.constant 0.000000e+00 : f32
    %91 = vector.broadcast %cst_42 : f32 to vector<4x160xf32>
    %92 = arith.maximumf %90, %91 : vector<4x160xf32>
    %93 = vector.extract_strided_slice %7 {offsets = [0, 0], sizes = [1, 160], strides = [1, 1]} : vector<1x192xi32> to vector<1x160xi32>
    %c16_i32_43 = arith.constant 16 : i32
    %94 = vector.broadcast %c16_i32_43 : i32 to vector<1x160xi32>
    %95 = arith.cmpi slt, %93, %94 : vector<1x160xi32>
    %c0_i32_44 = arith.constant 0 : i32
    %96 = arith.cmpi eq, %arg1, %c0_i32_44 : i32
    %97 = vector.broadcast %96 : i1 to vector<1x160xi1>
    %98 = arith.andi %95, %97 : vector<1x160xi1>
    %99 = vector.extract_strided_slice %7 {offsets = [0, 0], sizes = [1, 160], strides = [1, 1]} : vector<1x192xi32> to vector<1x160xi32>
    %c144_i32 = arith.constant 144 : i32
    %100 = vector.broadcast %c144_i32 : i32 to vector<1x160xi32>
    %101 = arith.cmpi sge, %99, %100 : vector<1x160xi32>
    %c1_i32_45 = arith.constant 1 : i32
    %102 = arith.cmpi eq, %arg1, %c1_i32_45 : i32
    %103 = vector.broadcast %102 : i1 to vector<1x160xi1>
    %104 = arith.andi %101, %103 : vector<1x160xi1>
    %105 = arith.ori %98, %104 : vector<1x160xi1>
    %cst_46 = arith.constant 0.000000e+00 : f32
    %106 = vector.shape_cast %105 : vector<1x160xi1> to vector<1x160xi1>
    %107 = vector.broadcast %106 : vector<1x160xi1> to vector<4x160xi1>
    %108 = vector.broadcast %cst_46 : f32 to vector<4x160xf32>
    %109 = arith.select %107, %108, %92 : vector<4x160xi1>, vector<4x160xf32>
    %110 = arith.truncf %109 : vector<4x160xf32> to vector<4x160xbf16>
    %cst_47 = arith.constant 0.000000e+00 : bf16
    %111 = vector.broadcast %cst_47 : bf16 to vector<4x1xbf16>
    %112 = vector.extract_strided_slice %25 {offsets = [0, 0], sizes = [1, 160], strides = [1, 1]} : vector<1x192xi1> to vector<1x160xi1>
    %113 = vector.extract_strided_slice %110 {offsets = [0, 0], sizes = [4, 159], strides = [1, 1]} : vector<4x160xbf16> to vector<4x159xbf16>
    %114 = tpu.concatenate %111, %113 in 1 : vector<4x1xbf16>, vector<4x159xbf16> -> vector<4x160xbf16>
    %c0_i32_48 = arith.constant 0 : i32
    %115 = arith.sitofp %c0_i32_48 : i32 to bf16
    %116 = vector.shape_cast %112 : vector<1x160xi1> to vector<1x160xi1>
    %117 = vector.broadcast %116 : vector<1x160xi1> to vector<4x160xi1>
    %118 = vector.broadcast %115 : bf16 to vector<4x160xbf16>
    %119 = arith.select %117, %118, %114 : vector<4x160xi1>, vector<4x160xbf16>
    %120 = vector.extract_strided_slice %27 {offsets = [0, 0], sizes = [1, 160], strides = [1, 1]} : vector<1x192xi1> to vector<1x160xi1>
    %121 = vector.extract_strided_slice %110 {offsets = [0, 1], sizes = [4, 159], strides = [1, 1]} : vector<4x160xbf16> to vector<4x159xbf16>
    %122 = tpu.concatenate %121, %111 in 1 : vector<4x159xbf16>, vector<4x1xbf16> -> vector<4x160xbf16>
    %c0_i32_49 = arith.constant 0 : i32
    %123 = arith.sitofp %c0_i32_49 : i32 to bf16
    %124 = vector.shape_cast %120 : vector<1x160xi1> to vector<1x160xi1>
    %125 = vector.broadcast %124 : vector<1x160xi1> to vector<4x160xi1>
    %126 = vector.broadcast %123 : bf16 to vector<4x160xbf16>
    %127 = arith.select %125, %126, %122 : vector<4x160xi1>, vector<4x160xbf16>
    %128 = vector.extract_strided_slice %119 {offsets = [0, 0], sizes = [4, 128], strides = [1, 1]} : vector<4x160xbf16> to vector<4x128xbf16>
    %c0_50 = arith.constant 0 : index
    %c0_51 = arith.constant 0 : index
    %c0_52 = arith.constant 0 : index
    %129 = vector.load %arg6[%c0_50, %c0_51, %c0_52] : memref<9x4x4xbf16, #tpu.memory_space<vmem>>, vector<1x4x4xbf16>
    %130 = vector.shape_cast %129 : vector<1x4x4xbf16> to vector<4x4xbf16>
    %cst_53 = arith.constant dense<0.000000e+00> : vector<4x128xf32>
    %131 = tpu.matmul %130, %128, %cst_53 {dimension_numbers = #tpu.dot_dimension_numbers<[1], [0], [0], [1], [0, 0, 1, 1], [], []>} : vector<4x4xbf16>, vector<4x128xbf16>, vector<4x128xf32> -> vector<4x128xf32>
    %132 = vector.extract_strided_slice %110 {offsets = [0, 0], sizes = [4, 128], strides = [1, 1]} : vector<4x160xbf16> to vector<4x128xbf16>
    %c1_54 = arith.constant 1 : index
    %c0_55 = arith.constant 0 : index
    %c0_56 = arith.constant 0 : index
    %133 = vector.load %arg6[%c1_54, %c0_55, %c0_56] : memref<9x4x4xbf16, #tpu.memory_space<vmem>>, vector<1x4x4xbf16>
    %134 = vector.shape_cast %133 : vector<1x4x4xbf16> to vector<4x4xbf16>
    %cst_57 = arith.constant dense<0.000000e+00> : vector<4x128xf32>
    %135 = tpu.matmul %134, %132, %cst_57 {dimension_numbers = #tpu.dot_dimension_numbers<[1], [0], [0], [1], [0, 0, 1, 1], [], []>} : vector<4x4xbf16>, vector<4x128xbf16>, vector<4x128xf32> -> vector<4x128xf32>
    %136 = arith.addf %131, %135 : vector<4x128xf32>
    %137 = vector.extract_strided_slice %127 {offsets = [0, 0], sizes = [4, 128], strides = [1, 1]} : vector<4x160xbf16> to vector<4x128xbf16>
    %c2_58 = arith.constant 2 : index
    %c0_59 = arith.constant 0 : index
    %c0_60 = arith.constant 0 : index
    %138 = vector.load %arg6[%c2_58, %c0_59, %c0_60] : memref<9x4x4xbf16, #tpu.memory_space<vmem>>, vector<1x4x4xbf16>
    %139 = vector.shape_cast %138 : vector<1x4x4xbf16> to vector<4x4xbf16>
    %cst_61 = arith.constant dense<0.000000e+00> : vector<4x128xf32>
    %140 = tpu.matmul %139, %137, %cst_61 {dimension_numbers = #tpu.dot_dimension_numbers<[1], [0], [0], [1], [0, 0, 1, 1], [], []>} : vector<4x4xbf16>, vector<4x128xbf16>, vector<4x128xf32> -> vector<4x128xf32>
    %141 = arith.addf %136, %140 : vector<4x128xf32>
    %142 = vector.extract_strided_slice %119 {offsets = [0, 16], sizes = [4, 128], strides = [1, 1]} : vector<4x160xbf16> to vector<4x128xbf16>
    %c3_62 = arith.constant 3 : index
    %c0_63 = arith.constant 0 : index
    %c0_64 = arith.constant 0 : index
    %143 = vector.load %arg6[%c3_62, %c0_63, %c0_64] : memref<9x4x4xbf16, #tpu.memory_space<vmem>>, vector<1x4x4xbf16>
    %144 = vector.shape_cast %143 : vector<1x4x4xbf16> to vector<4x4xbf16>
    %cst_65 = arith.constant dense<0.000000e+00> : vector<4x128xf32>
    %145 = tpu.matmul %144, %142, %cst_65 {dimension_numbers = #tpu.dot_dimension_numbers<[1], [0], [0], [1], [0, 0, 1, 1], [], []>} : vector<4x4xbf16>, vector<4x128xbf16>, vector<4x128xf32> -> vector<4x128xf32>
    %146 = arith.addf %141, %145 : vector<4x128xf32>
    %147 = vector.extract_strided_slice %110 {offsets = [0, 16], sizes = [4, 128], strides = [1, 1]} : vector<4x160xbf16> to vector<4x128xbf16>
    %c4_66 = arith.constant 4 : index
    %c0_67 = arith.constant 0 : index
    %c0_68 = arith.constant 0 : index
    %148 = vector.load %arg6[%c4_66, %c0_67, %c0_68] : memref<9x4x4xbf16, #tpu.memory_space<vmem>>, vector<1x4x4xbf16>
    %149 = vector.shape_cast %148 : vector<1x4x4xbf16> to vector<4x4xbf16>
    %cst_69 = arith.constant dense<0.000000e+00> : vector<4x128xf32>
    %150 = tpu.matmul %149, %147, %cst_69 {dimension_numbers = #tpu.dot_dimension_numbers<[1], [0], [0], [1], [0, 0, 1, 1], [], []>} : vector<4x4xbf16>, vector<4x128xbf16>, vector<4x128xf32> -> vector<4x128xf32>
    %151 = arith.addf %146, %150 : vector<4x128xf32>
    %152 = vector.extract_strided_slice %127 {offsets = [0, 16], sizes = [4, 128], strides = [1, 1]} : vector<4x160xbf16> to vector<4x128xbf16>
    %c5_70 = arith.constant 5 : index
    %c0_71 = arith.constant 0 : index
    %c0_72 = arith.constant 0 : index
    %153 = vector.load %arg6[%c5_70, %c0_71, %c0_72] : memref<9x4x4xbf16, #tpu.memory_space<vmem>>, vector<1x4x4xbf16>
    %154 = vector.shape_cast %153 : vector<1x4x4xbf16> to vector<4x4xbf16>
    %cst_73 = arith.constant dense<0.000000e+00> : vector<4x128xf32>
    %155 = tpu.matmul %154, %152, %cst_73 {dimension_numbers = #tpu.dot_dimension_numbers<[1], [0], [0], [1], [0, 0, 1, 1], [], []>} : vector<4x4xbf16>, vector<4x128xbf16>, vector<4x128xf32> -> vector<4x128xf32>
    %156 = arith.addf %151, %155 : vector<4x128xf32>
    %157 = vector.extract_strided_slice %119 {offsets = [0, 32], sizes = [4, 128], strides = [1, 1]} : vector<4x160xbf16> to vector<4x128xbf16>
    %c6_74 = arith.constant 6 : index
    %c0_75 = arith.constant 0 : index
    %c0_76 = arith.constant 0 : index
    %158 = vector.load %arg6[%c6_74, %c0_75, %c0_76] : memref<9x4x4xbf16, #tpu.memory_space<vmem>>, vector<1x4x4xbf16>
    %159 = vector.shape_cast %158 : vector<1x4x4xbf16> to vector<4x4xbf16>
    %cst_77 = arith.constant dense<0.000000e+00> : vector<4x128xf32>
    %160 = tpu.matmul %159, %157, %cst_77 {dimension_numbers = #tpu.dot_dimension_numbers<[1], [0], [0], [1], [0, 0, 1, 1], [], []>} : vector<4x4xbf16>, vector<4x128xbf16>, vector<4x128xf32> -> vector<4x128xf32>
    %161 = arith.addf %156, %160 : vector<4x128xf32>
    %162 = vector.extract_strided_slice %110 {offsets = [0, 32], sizes = [4, 128], strides = [1, 1]} : vector<4x160xbf16> to vector<4x128xbf16>
    %c7_78 = arith.constant 7 : index
    %c0_79 = arith.constant 0 : index
    %c0_80 = arith.constant 0 : index
    %163 = vector.load %arg6[%c7_78, %c0_79, %c0_80] : memref<9x4x4xbf16, #tpu.memory_space<vmem>>, vector<1x4x4xbf16>
    %164 = vector.shape_cast %163 : vector<1x4x4xbf16> to vector<4x4xbf16>
    %cst_81 = arith.constant dense<0.000000e+00> : vector<4x128xf32>
    %165 = tpu.matmul %164, %162, %cst_81 {dimension_numbers = #tpu.dot_dimension_numbers<[1], [0], [0], [1], [0, 0, 1, 1], [], []>} : vector<4x4xbf16>, vector<4x128xbf16>, vector<4x128xf32> -> vector<4x128xf32>
    %166 = arith.addf %161, %165 : vector<4x128xf32>
    %167 = vector.extract_strided_slice %127 {offsets = [0, 32], sizes = [4, 128], strides = [1, 1]} : vector<4x160xbf16> to vector<4x128xbf16>
    %c8_82 = arith.constant 8 : index
    %c0_83 = arith.constant 0 : index
    %c0_84 = arith.constant 0 : index
    %168 = vector.load %arg6[%c8_82, %c0_83, %c0_84] : memref<9x4x4xbf16, #tpu.memory_space<vmem>>, vector<1x4x4xbf16>
    %169 = vector.shape_cast %168 : vector<1x4x4xbf16> to vector<4x4xbf16>
    %cst_85 = arith.constant dense<0.000000e+00> : vector<4x128xf32>
    %170 = tpu.matmul %169, %167, %cst_85 {dimension_numbers = #tpu.dot_dimension_numbers<[1], [0], [0], [1], [0, 0, 1, 1], [], []>} : vector<4x4xbf16>, vector<4x128xbf16>, vector<4x128xf32> -> vector<4x128xf32>
    %171 = arith.addf %166, %170 : vector<4x128xf32>
    %c0_86 = arith.constant 0 : index
    %c0_87 = arith.constant 0 : index
    %172 = vector.load %arg7[%c0_86, %c0_87] : memref<4x1xf32, #tpu.memory_space<vmem>>, vector<4x1xf32>
    %173 = vector.broadcast %172 : vector<4x1xf32> to vector<4x128xf32>
    %174 = arith.addf %171, %173 : vector<4x128xf32>
    %175 = arith.addf %174, %1 : vector<4x128xf32>
    %c0_88 = arith.constant 0 : index
    %c0_89 = arith.constant 0 : index
    %c0_90 = arith.constant 0 : index
    %176 = vector.load %arg8[%c0_88, %c0_89, %c0_90] : memref<1x4x128xf32, #tpu.memory_space<vmem>>, vector<1x4x128xf32>
    %177 = vector.shape_cast %176 : vector<1x4x128xf32> to vector<4x128xf32>
    %178 = vector.shape_cast %175 : vector<4x128xf32> to vector<1x4x128xf32>
    tpu.vector_store %arg8[%c0_88, %c0_89, %c0_90], %178 {strides = array<i32>} : memref<1x4x128xf32, #tpu.memory_space<vmem>>, vector<1x4x128xf32>,
    return
  }
  func.func @transform_0(%arg0: i32, %arg1: i32) -> (i32, i32, i32) {
    %c0_i32 = arith.constant 0 : i32
    %c0_i32_0 = arith.constant 0 : i32
    return %arg0, %c0_i32, %arg1 : i32, i32, i32
  }
  func.func @transform_1(%arg0: i32, %arg1: i32) -> (i32, i32, i32, i32) {
    %c0_i32 = arith.constant 0 : i32
    %c0_i32_0 = arith.constant 0 : i32
    %c0_i32_1 = arith.constant 0 : i32
    return %arg0, %arg1, %c0_i32, %c0_i32_0 : i32, i32, i32, i32
  }
  func.func @transform_2(%arg0: i32, %arg1: i32) -> (i32, i32, i32) {
    %c0_i32 = arith.constant 0 : i32
    %c0_i32_0 = arith.constant 0 : i32
    %c0_i32_1 = arith.constant 0 : i32
    %c0_i32_2 = arith.constant 0 : i32
    return %c0_i32, %c0_i32_0, %c0_i32_1 : i32, i32, i32
  }
  func.func @transform_3(%arg0: i32, %arg1: i32) -> (i32, i32) {
    %c0_i32 = arith.constant 0 : i32
    %c0_i32_0 = arith.constant 0 : i32
    %c0_i32_1 = arith.constant 0 : i32
    return %c0_i32, %c0_i32_0 : i32, i32
  }
  func.func @transform_4(%arg0: i32, %arg1: i32) -> (i32, i32, i32) {
    %c0_i32 = arith.constant 0 : i32
    %c0_i32_0 = arith.constant 0 : i32
    %c0_i32_1 = arith.constant 0 : i32
    %c0_i32_2 = arith.constant 0 : i32
    return %c0_i32, %c0_i32_0, %c0_i32_1 : i32, i32, i32
  }
  func.func @transform_5(%arg0: i32, %arg1: i32) -> (i32, i32) {
    %c0_i32 = arith.constant 0 : i32
    %c0_i32_0 = arith.constant 0 : i32
    %c0_i32_1 = arith.constant 0 : i32
    return %c0_i32, %c0_i32_0 : i32, i32
  }
  func.func @transform_6(%arg0: i32, %arg1: i32) -> (i32, i32, i32) {
    %c0_i32 = arith.constant 0 : i32
    %c0_i32_0 = arith.constant 0 : i32
    return %arg0, %c0_i32, %arg1 : i32, i32, i32
  }
}

</mosaic_0001>

<llo_original>
// kernel: residual_block_nobn.1
$region0: #{residual_block_nobn.1}
  #allocation0 [shape = 'u32[]', space=smem, size = 0x4, offset = 0x4, fixed_abs, tag = 'smem constant byte address 0x4 - core index']
  #allocation1 [shape = 'u32[144,128]{1,0:T(1,128)}', space=vmem, size = 0x12000, scoped, tag = 'internal scratch']
  %s0 = inlined_call_operand.vmem [shape: f32[2,4,256], index: 0, kind: input, shape index: {}]
  %s1 = inlined_call_operand.vmem [shape: f32[2,2,4,64], index: 1, kind: input, shape index: {}]
  %s2 = inlined_call_operand.vmem [shape: bf16[9,4,4], index: 2, kind: input, shape index: {}]
  %s3 = inlined_call_operand.vmem [shape: f32[4,1], index: 3, kind: input, shape index: {}]
  %s4 = inlined_call_operand.vmem [shape: bf16[9,4,4], index: 4, kind: input, shape index: {}]
  %s5 = inlined_call_operand.vmem [shape: f32[4,1], index: 5, kind: input, shape index: {}]
  %s6 = inlined_call_operand.vmem [shape: f32[2,4,256], index: 6, kind: output, shape index: {}]
  %s7 = sld [smem:[#allocation0]]
  $region57: #{residual_block_nobn.1} parent=0
    _
  %s9 = ssub.s32 1, %s7
  %s10 = scalar_select 0, %s9, %s7
  loop: start=0, step=1, limit=6
  $region2: #{residual_block_nobn.1} parent=0 // loop_pre_header
    _
  $region3: #{residual_block_nobn.1} parent=0 // loop_header
    %s12 = sphi 0, %s16
    %p13 = scmp.ge.s32.totalorder %s12, 6
    %s19 = sphi 0, %s31
    %s20 = sphi 0, %s27
    %s21 = sphi 0, %s19
    %s22 = sphi 0, %s20
    %s23 = sphi 0, %s21
    %s24 = sphi 0, %s22
    %s36 = sphi 0, %s38
    %s39 = sphi 0, %s36
    %s40 = sphi 0, %s39
    %s56 = sphi 0, %s40
    %s64 = sphi 0, %s66
    %s67 = sphi 0, %s64
    %s68 = sphi 0, %s67
    %s84 = sphi 0, %s68
    %s88 = sphi 0, %s88
    %s90 = sphi 0, %s88
    %s91 = sphi 0, %s90
    %s105 = sphi 0, %s91
    %s109 = sphi 0, %s109
    %s111 = sphi 0, %s109
    %s112 = sphi 0, %s111
    %s126 = sphi 0, %s112
    %s130 = sphi 0, %s130
    %s132 = sphi 0, %s130
    %s133 = sphi 0, %s132
    %s147 = sphi 0, %s133
    %s151 = sphi 0, %s151
    %s153 = sphi 0, %s151
    %s154 = sphi 0, %s153
    %s168 = sphi 0, %s154
    %s176 = sphi 0, %s178
    %s179 = sphi 0, %s176
    %s180 = sphi 0, %s179
    %s196 = sphi 0, %s180
  $region4: #{residual_block_nobn.1} parent=0 // loop_header_branch
    %15 = sbr.rel (%p13) target = $region8
  $region5: #{residual_block_nobn.1} parent=0 // loop_body
    %s17 = ssub.s32 %s12, 1
    %s18 = ssub.s32 %s12, 2
    %s25 = sadd.s32 1, %s20
    %p26 = scmp.ge.s32.totalorder %s25, 2
    %s27 = scalar_select %p26, 0, %s25
    %s28 = sadd.s32 1, %s19
    %s29 = scalar_select %p26, %s28, %s19
    %p30 = scmp.ge.s32.totalorder %s29, 2
    %s31 = scalar_select %p30, 0, %s29
    %s32 = ssub.s32 %s19, %s31
    %s33 = ssub.s32 %s20, %s27
    %s34 = sor.u32 %s32, %s33
    %p35 = scmp.eq.s32.totalorder %s34, 0
    %s37 = sadd.s32 %s36, 1
    %s38 = scalar_select %p35, %s36, %s37
    %p41 = pneg %p35
    %p42 = scmp.eq.s32.totalorder %s12, 3
    %p43 = por %p41, %p42
    %p44 = scmp.ne.s32.totalorder %s36, %s39
    %p45 = scmp.eq.s32.totalorder %s12, 0
    %p46 = por %p44, %p45
    %p47 = scmp.ne.s32.totalorder %s36, %s39
    %p48 = scmp.eq.s32.totalorder %s17, 3
    %p49 = por %p47, %p48
    %p50 = scmp.ne.s32.totalorder %s39, %s40
    %p51 = scmp.eq.s32.totalorder %s17, 0
    %p52 = por %p50, %p51
    %p53 = scmp.ne.s32.totalorder %s39, %s40
    %p54 = scmp.eq.s32.totalorder %s18, 3
    %p55 = por %p53, %p54
    %p57 = scmp.ne.s32.totalorder %s40, %s56
    %p58 = scmp.eq.s32.totalorder %s18, 0
    %p59 = por %p57, %p58
    %s60 = ssub.s32 %s19, %s31
    %s61 = ssub.s32 %s20, %s27
    %s62 = sor.u32 %s60, %s61
    %p63 = scmp.eq.s32.totalorder %s62, 0
    %s65 = sadd.s32 %s64, 1
    %s66 = scalar_select %p63, %s64, %s65
    %p69 = pneg %p63
    %p70 = scmp.eq.s32.totalorder %s12, 3
    %p71 = por %p69, %p70
    %p72 = scmp.ne.s32.totalorder %s64, %s67
    %p73 = scmp.eq.s32.totalorder %s12, 0
    %p74 = por %p72, %p73
    %p75 = scmp.ne.s32.totalorder %s64, %s67
    %p76 = scmp.eq.s32.totalorder %s17, 3
    %p77 = por %p75, %p76
    %p78 = scmp.ne.s32.totalorder %s67, %s68
    %p79 = scmp.eq.s32.totalorder %s17, 0
    %p80 = por %p78, %p79
    %p81 = scmp.ne.s32.totalorder %s67, %s68
    %p82 = scmp.eq.s32.totalorder %s18, 3
    %p83 = por %p81, %p82
    %p85 = scmp.ne.s32.totalorder %s68, %s84
    %p86 = scmp.eq.s32.totalorder %s18, 0
    %p87 = por %p85, %p86
    %s89 = sadd.s32 %s88, 1
    %p92 = scmp.eq.s32.totalorder %s12, 3
    %p93 = scmp.ne.s32.totalorder %s88, %s90
    %p94 = scmp.eq.s32.totalorder %s12, 0
    %p95 = por %p93, %p94
    %p96 = scmp.ne.s32.totalorder %s88, %s90
    %p97 = scmp.eq.s32.totalorder %s17, 3
    %p98 = por %p96, %p97
    %p99 = scmp.ne.s32.totalorder %s90, %s91
    %p100 = scmp.eq.s32.totalorder %s17, 0
    %p101 = por %p99, %p100
    %p102 = scmp.ne.s32.totalorder %s90, %s91
    %p103 = scmp.eq.s32.totalorder %s18, 3
    %p104 = por %p102, %p103
    %p106 = scmp.ne.s32.totalorder %s91, %s105
    %p107 = scmp.eq.s32.totalorder %s18, 0
    %p108 = por %p106, %p107
    %s110 = sadd.s32 %s109, 1
    %p113 = scmp.eq.s32.totalorder %s12, 3
    %p114 = scmp.ne.s32.totalorder %s109, %s111
    %p115 = scmp.eq.s32.totalorder %s12, 0
    %p116 = por %p114, %p115
    %p117 = scmp.ne.s32.totalorder %s109, %s111
    %p118 = scmp.eq.s32.totalorder %s17, 3
    %p119 = por %p117, %p118
    %p120 = scmp.ne.s32.totalorder %s111, %s112
    %p121 = scmp.eq.s32.totalorder %s17, 0
    %p122 = por %p120, %p121
    %p123 = scmp.ne.s32.totalorder %s111, %s112
    %p124 = scmp.eq.s32.totalorder %s18, 3
    %p125 = por %p123, %p124
    %p127 = scmp.ne.s32.totalorder %s112, %s126
    %p128 = scmp.eq.s32.totalorder %s18, 0
    %p129 = por %p127, %p128
    %s131 = sadd.s32 %s130, 1
    %p134 = scmp.eq.s32.totalorder %s12, 3
    %p135 = scmp.ne.s32.totalorder %s130, %s132
    %p136 = scmp.eq.s32.totalorder %s12, 0
    %p137 = por %p135, %p136
    %p138 = scmp.ne.s32.totalorder %s130, %s132
    %p139 = scmp.eq.s32.totalorder %s17, 3
    %p140 = por %p138, %p139
    %p141 = scmp.ne.s32.totalorder %s132, %s133
    %p142 = scmp.eq.s32.totalorder %s17, 0
    %p143 = por %p141, %p142
    %p144 = scmp.ne.s32.totalorder %s132, %s133
    %p145 = scmp.eq.s32.totalorder %s18, 3
    %p146 = por %p144, %p145
    %p148 = scmp.ne.s32.totalorder %s133, %s147
    %p149 = scmp.eq.s32.totalorder %s18, 0
    %p150 = por %p148, %p149
    %s152 = sadd.s32 %s151, 1
    %p155 = scmp.eq.s32.totalorder %s12, 3
    %p156 = scmp.ne.s32.totalorder %s151, %s153
    %p157 = scmp.eq.s32.totalorder %s12, 0
    %p158 = por %p156, %p157
    %p159 = scmp.ne.s32.totalorder %s151, %s153
    %p160 = scmp.eq.s32.totalorder %s17, 3
    %p161 = por %p159, %p160
    %p162 = scmp.ne.s32.totalorder %s153, %s154
    %p163 = scmp.eq.s32.totalorder %s17, 0
    %p164 = por %p162, %p163
    %p165 = scmp.ne.s32.totalorder %s153, %s154
    %p166 = scmp.eq.s32.totalorder %s18, 3
    %p167 = por %p165, %p166
    %p169 = scmp.ne.s32.totalorder %s154, %s168
    %p170 = scmp.eq.s32.totalorder %s18, 0
    %p171 = por %p169, %p170
    %s172 = ssub.s32 %s19, %s31
    %s173 = ssub.s32 %s20, %s27
    %s174 = sor.u32 %s172, %s173
    %p175 = scmp.eq.s32.totalorder %s174, 0
    %s177 = sadd.s32 %s176, 1
    %s178 = scalar_select %p175, %s176, %s177
    %p181 = pneg %p175
    %p182 = scmp.eq.s32.totalorder %s12, 3
    %p183 = por %p181, %p182
    %p184 = scmp.ne.s32.totalorder %s176, %s179
    %p185 = scmp.eq.s32.totalorder %s12, 0
    %p186 = por %p184, %p185
    %p187 = scmp.ne.s32.totalorder %s176, %s179
    %p188 = scmp.eq.s32.totalorder %s17, 3
    %p189 = por %p187, %p188
    %p190 = scmp.ne.s32.totalorder %s179, %s180
    %p191 = scmp.eq.s32.totalorder %s17, 0
    %p192 = por %p190, %p191
    %p193 = scmp.ne.s32.totalorder %s179, %s180
    %p194 = scmp.eq.s32.totalorder %s18, 3
    %p195 = por %p193, %p194
    %p197 = scmp.ne.s32.totalorder %s180, %s196
    %p198 = scmp.eq.s32.totalorder %s18, 0
    %p199 = por %p197, %p198
    %p200 = scmp.le.s32.totalorder 1, %s12
    %p201 = scmp.lt.s32.totalorder %s12, 5
    %p202 = pnand %p200, %p201
    %p203 = pneg %p202
    // Predicated region
    $region9: #{residual_block_nobn.1} parent=5 // pred_check
      _
    $region10: #{residual_block_nobn.1} parent=5 // pred_check_branch
      %205 = sbr.rel (%p202) target = $region12
    $region11: #{residual_block_nobn.1} parent=5 // pred_region
      %s206 = ssub.s32 %s12, 1
      // Predicated region
      $region13: #{residual_block_nobn.1} parent=11 // pred_check
        %p207 = pneg %p101
      $region14: #{residual_block_nobn.1} parent=11 // pred_check_branch
        %209 = sbr.rel (%p207) target = $region16
      $region15: #{residual_block_nobn.1} parent=11 // pred_region
        _
      $region16: #{residual_block_nobn.1} parent=11 // pred_fallthru
        _
      // Predicated region
      $region17: #{residual_block_nobn.1} parent=11 // pred_check
        %p210 = pneg %p122
      $region18: #{residual_block_nobn.1} parent=11 // pred_check_branch
        %212 = sbr.rel (%p210) target = $region20
      $region19: #{residual_block_nobn.1} parent=11 // pred_region
        _
      $region20: #{residual_block_nobn.1} parent=11 // pred_fallthru
        _
      // Predicated region
      $region21: #{residual_block_nobn.1} parent=11 // pred_check
        %p213 = pneg %p143
      $region22: #{residual_block_nobn.1} parent=11 // pred_check_branch
        %215 = sbr.rel (%p213) target = $region24
      $region23: #{residual_block_nobn.1} parent=11 // pred_region
        _
      $region24: #{residual_block_nobn.1} parent=11 // pred_fallthru
        _
      // Predicated region
      $region25: #{residual_block_nobn.1} parent=11 // pred_check
        %p216 = pneg %p164
      $region26: #{residual_block_nobn.1} parent=11 // pred_check_branch
        %218 = sbr.rel (%p216) target = $region28
      $region27: #{residual_block_nobn.1} parent=11 // pred_region
        _
      $region28: #{residual_block_nobn.1} parent=11 // pred_fallthru
        _
    $region12: #{residual_block_nobn.1} parent=5 // pred_fallthru
      _
    %p219 = scmp.lt.s32.totalorder %s12, 4
    // Predicated region
    $region29: #{residual_block_nobn.1} parent=5 // pred_check
      %p220 = pneg %p219
    $region30: #{residual_block_nobn.1} parent=5 // pred_check_branch
      %222 = sbr.rel (%p220) target = $region32
    $region31: #{residual_block_nobn.1} parent=5 // pred_region
      // Predicated region
      $region33: #{residual_block_nobn.1} parent=31 // pred_check
        %p223 = pneg %p46
      $region34: #{residual_block_nobn.1} parent=31 // pred_check_branch
        %225 = sbr.rel (%p223) target = $region36
      $region35: #{residual_block_nobn.1} parent=31 // pred_region
        %p226 = scmp.lt.s32.totalorder %s19, 1
        %s227 = scalar_select %p226, %s19, 1
        %p228 = scmp.lt.s32.totalorder %s20, 1
        %s229 = scalar_select %p228, %s20, 1
        %s230 = smul.addr %s227, 2
        %s231 = sadd.s32 %s229, %s230
        %s232 = smul.addr %s231, 4
        %s233 = scalar_lea.vmem %s0, %s232
      $region36: #{residual_block_nobn.1} parent=31 // pred_fallthru
        _
      // Predicated region
      $region37: #{residual_block_nobn.1} parent=31 // pred_check
        %p234 = pneg %p74
      $region38: #{residual_block_nobn.1} parent=31 // pred_check_branch
        %236 = sbr.rel (%p234) target = $region40
      $region39: #{residual_block_nobn.1} parent=31 // pred_region
        %p237 = scmp.lt.s32.totalorder %s19, 1
        %s238 = scalar_select %p237, %s19, 1
        %p239 = scmp.lt.s32.totalorder %s20, 1
        %s240 = scalar_select %p239, %s20, 1
        %s241 = smul.addr %s238, 2
        %s242 = sadd.s32 %s240, %s241
        %s243 = smul.addr %s242, 4
        %s244 = scalar_lea.vmem %s1, %s243
      $region40: #{residual_block_nobn.1} parent=31 // pred_fallthru
        _
    $region32: #{residual_block_nobn.1} parent=5 // pred_fallthru
      _
    %p245 = scmp.le.s32.totalorder 1, %s12
    %p246 = scmp.lt.s32.totalorder %s12, 5
    %p247 = pnand %p245, %p246
    %p248 = pneg %p247
    // Predicated region
    $region41: #{residual_block_nobn.1} parent=5 // pred_check
      _
    $region42: #{residual_block_nobn.1} parent=5 // pred_check_branch
      %250 = sbr.rel (%p247) target = $region44
    $region43: #{residual_block_nobn.1} parent=5 // pred_region
      %s251 = ssub.s32 %s12, 1
      %p252 = scmp.lt.s32.totalorder %s21, 1
      %s253 = scalar_select %p252, %s21, 1
      %p254 = scmp.lt.s32.totalorder %s22, 1
      %s255 = scalar_select %p254, %s22, 1
      %s256 = smul.addr %s253, 2
      %s257 = sadd.s32 %s255, %s256
      %s258 = smul.addr %s257, 4
      %s259 = scalar_lea.vmem %s0, %s258
      %p260 = pneg %p52
      %p261 = pneg %p49
      %p262 = scmp.lt.s32.totalorder %s21, 1
      %s263 = scalar_select %p262, %s21, 1
      %p264 = scmp.lt.s32.totalorder %s22, 1
      %s265 = scalar_select %p264, %s22, 1
      %s266 = smul.addr %s263, 2
      %s267 = sadd.s32 %s265, %s266
      %s268 = smul.addr %s267, 4
      %s269 = scalar_lea.vmem %s1, %s268
      %p270 = pneg %p80
      %p271 = pneg %p77
      %p272 = pneg %p101
      %p273 = pneg %p98
      %p274 = pneg %p122
      %p275 = pneg %p119
      %p276 = pneg %p143
      %p277 = pneg %p140
      %p278 = pneg %p164
      %p279 = pneg %p161
      %p280 = pneg %p192
      %p281 = pneg %p189
      %p282 = scmp.lt.s32.totalorder %s21, 1
      %s283 = scalar_select %p282, %s21, 1
      %p284 = scmp.lt.s32.totalorder %s22, 1
      %s285 = scalar_select %p284, %s22, 1
      %s286 = smul.addr %s283, 2
      %s287 = sadd.s32 %s285, %s286
      %s288 = smul.addr %s287, 4
      %s289 = scalar_lea.vmem %s6, %s288
      %p290 = scmp.lt.s32.totalorder %s21, 1
      %s291 = scalar_select %p290, %s21, 1
      %p292 = scmp.lt.s32.totalorder %s22, 1
      %s293 = scalar_select %p292, %s22, 1
      %s294 = smul.addr %s291, 2
      %s295 = sadd.s32 %s293, %s294
      %s296 = smul.addr %s295, 4
      %s297 = scalar_lea.vmem %s0, %s296
      %p298 = scmp.lt.s32.totalorder %s21, 1
      %s299 = scalar_select %p298, %s21, 1
      %p300 = scmp.lt.s32.totalorder %s22, 1
      %s301 = scalar_select %p300, %s22, 1
      %s302 = smul.addr %s299, 2
      %s303 = sadd.s32 %s301, %s302
      %s304 = smul.addr %s303, 4
      %s305 = scalar_lea.vmem %s1, %s304
      %p306 = scmp.lt.s32.totalorder %s21, 1
      %s307 = scalar_select %p306, %s21, 1
      %p308 = scmp.lt.s32.totalorder %s22, 1
      %s309 = scalar_select %p308, %s22, 1
      %s310 = smul.addr %s307, 2
      %s311 = sadd.s32 %s309, %s310
      %s312 = smul.addr %s311, 4
      %s313 = scalar_lea.vmem %s6, %s312
      %v317 = vld [vmem:[%s297] sm:$0xf]
      %v318 = vld [vmem:[%s305] sm:$0xf]
      %320 = vrot.lane.b32.xlu0 %v317, 32
      %v321 = vpop.permute.xlu0 %320
      %vm323 = vcmask 261120
      %v324 = vsel %vm323, %v318, %v321
      %v325 = vsel %vm323, %v321, %v318
      %v326 = vlaneseq
      %v327 = vand.u32 %v326, 127
      %v328 = vadd.s32 %v327, 128
      %vm329 = vcmp.lt.s32.totalorder %v327, 0
      %v330 = vsub.s32 0, %v327
      %v331 = vsel %vm329, %v330, %v327
      %v332 = vshrl.u32 %v331, 4
      %v333 = vand.u32 %v331, 15
      %v334 = vsub.s32 0, %v333
      %v335 = vsel %vm329, %v334, %v333
      %vm336 = vcmp.lt.s32.totalorder %v328, 0
      %v337 = vsub.s32 0, %v328
      %v338 = vsel %vm336, %v337, %v328
      %v339 = vshrl.u32 %v338, 4
      %v340 = vand.u32 %v338, 15
      %v341 = vsub.s32 0, %v340
      %v342 = vsel %vm336, %v341, %v340
      %vm343 = vcmp.ne.s32.totalorder %v335, 0
      %vm344 = vcmp.ne.s32.totalorder %v342, 0
      %vm345 = vcmp.lt.s32.totalorder %v335, 0
      %vm346 = vcmp.lt.s32.totalorder %v342, 0
      %vm347 = vmand %vm345, %vm343
      %vm348 = vmand %vm346, %vm344
      %v349 = vadd.s32 %v335, 16
      %v350 = vadd.s32 %v342, 16
      %v351 = vsel %vm347, %v349, %v335
      %v352 = vsel %vm348, %v350, %v342
      %vm353 = vcmp.eq.s32.totalorder %v351, 0
      %vm354 = vcmp.eq.s32.totalorder %v352, 0
      %vm355 = vcmp.eq.s32.totalorder %v351, 15
      %vm356 = vcmp.eq.s32.totalorder %v352, 15
      %v357 = vpack.c.bf16 %v324, %v324
      %v358 = vpack.c.bf16 %v325, %v325
      %361 = vrot.lane.b32.xlu0 %v357, 1
      %v362 = vpop.permute.xlu0 %361
      %363 = vrot.lane.b32.xlu0 %v358, 1
      %v364 = vpop.permute.xlu0 %363
      %vm365 = vcmask 7168
      %v366 = vsel %vm365, %v362, %v364
      %vm368 = vcmask 7168
      %v371 = vsel %vm368, 0, %v362
      %v373 = vsel %vm353, 1, 0
      %v374 = vsel %vm354, 1, 0
      %vm375 = vcmp.eq.s32.totalorder %v373, 1
      %vm376 = vcmp.eq.s32.totalorder %v374, 1
      %vm377 = vmpackc.low %vm376, %vm375
      %v378 = vsel %vm377, 65537, 0
      %v379 = vlaneseq
      %v380 = vshrl.u32 %v379, 7
      %v381 = vsub.s32 0, %v380
      %v382 = vrot.slane %v378, %v381
      %v383 = vlaneseq
      %v384 = vshrl.u32 %v383, 7
      %v385 = vsub.s32 4, %v384
      %v386 = vrot.slane %v378, %v385
      %vm387 = vcmp.ne.s16.totalorder %v382, 0
      %vm388 = vcmp.ne.s16.totalorder %v386, 0
      %v389 = vsel %vm387, 0, %v371
      %v390 = vsel %vm388, 0, %v366
      %391 = vrot.lane.b32.xlu0 %v357, 127
      %v392 = vpop.permute.xlu0 %391
      %393 = vrot.lane.b32.xlu0 %v358, 127
      %v394 = vpop.permute.xlu0 %393
      %vm395 = vcmask 1039360
      %v396 = vsel %vm395, %v392, %v394
      %vm398 = vcmask 515072
      %v400 = vsel %vm398, %v394, 0
      %v402 = vsel %vm355, 1, 0
      %v403 = vsel %vm356, 1, 0
      %vm404 = vcmp.eq.s32.totalorder %v402, 1
      %vm405 = vcmp.eq.s32.totalorder %v403, 1
      %vm406 = vmpackc.low %vm405, %vm404
      %v407 = vsel %vm406, 65537, 0
      %v408 = vlaneseq
      %v409 = vshrl.u32 %v408, 7
      %v410 = vsub.s32 0, %v409
      %v411 = vrot.slane %v407, %v410
      %v412 = vlaneseq
      %v413 = vshrl.u32 %v412, 7
      %v414 = vsub.s32 4, %v413
      %v415 = vrot.slane %v407, %v414
      %vm416 = vcmp.ne.s16.totalorder %v411, 0
      %vm417 = vcmp.ne.s16.totalorder %v415, 0
      %v418 = vsel %vm416, 0, %v396
      %v419 = vsel %vm417, 0, %v400
      %v420 = vld [vmem:[%s2] sm:$0x3]
      %s421 = scalar_lea.vmem %s2, 2
      %v422 = vld [vmem:[%s421] sm:$0x3]
      %vm423 = vcmask 31744
      %v425 = vsel %vm423, %v422, 0
      %vm427 = vcmask 1041408
      %v429 = vsel %vm427, %v357, 0
      %v432 = vsel %vm427, %v358, 0
      %434 = vmatprep.subr.bf16.mxu0 0
      %435 = vmatpush1.bf16.msra.mxu0 0
      %436 = vmatprep.subr.bf16.mxu0 0
      %437 = vmatpush1.bf16.msra.mxu0 0
      %438 = vmatprep.subr.bf16.mxu0 0
      %439 = vmatpush1.bf16.msra.mxu0 0
      %440 = vmatprep.subr.bf16.mxu0 0
      %441 = vmatpush1.bf16.msra.mxu0 0
      %442 = vmatprep.subr.bf16.mxu0 0
      %443 = vmatpush1.bf16.msra.mxu0 0
      %444 = vmatprep.subr.bf16.mxu0 0
      %445 = vmatpush1.bf16.msra.mxu0 0
      %446 = vmatprep.subr.bf16.mxu0 0
      %447 = vmatpush1.bf16.msra.mxu0 0
      %448 = vmatprep.subr.bf16.mxu0 %v432
      %449 = vmatpush1.bf16.msra.mxu0 %v429
      %450 = vmatprep.subr.bf16.mxu0 0
      %451 = vmatpush2.bf16.msra.mxu0 0
      %452 = vmatprep.subr.bf16.mxu0 0
      %453 = vmatpush2.bf16.msra.mxu0 0
      %454 = vmatprep.subr.bf16.mxu0 0
      %455 = vmatpush2.bf16.msra.mxu0 0
      %456 = vmatprep.subr.bf16.mxu0 0
      %457 = vmatpush2.bf16.msra.mxu0 0
      %458 = vmatprep.subr.bf16.mxu0 0
      %459 = vmatpush2.bf16.msra.mxu0 0
      %460 = vmatprep.subr.bf16.mxu0 0
      %461 = vmatpush2.bf16.msra.mxu0 0
      %462 = vmatprep.subr.bf16.mxu0 0
      %463 = vmatpush2.bf16.msra.mxu0 0
      %464 = vmatprep.subr.bf16.mxu0 0
      %465 = vmatpush2.bf16.msra.mxu0 0
      %466 = vmatprep.mubr.bf16.mxu0 0
      %467 = vmatmul.mubr.bf16.gmra.mxu0 %v425
      %v468 = vpop.f32.mrf.mxu0
      %v469 = vadd.f32 0.0, %v468
      %v470 = vpop.f32.mrf.mxu0
      %v471 = vadd.f32 0.0, %v470
      %v472 = vpop.f32.mrf.mxu0
      %v473 = vpop.f32.mrf.mxu0
      %474 = vdwg.mxu0
      %v476 = vsel %vm423, %v420, 0
      %v479 = vsel %vm427, %v389, 0
      %v482 = vsel %vm427, %v390, 0
      %484 = vmatprep.subr.bf16.mxu0 0
      %485 = vmatpush1.bf16.msra.mxu0 0
      %486 = vmatprep.subr.bf16.mxu0 0
      %487 = vmatpush1.bf16.msra.mxu0 0
      %488 = vmatprep.subr.bf16.mxu0 0
      %489 = vmatpush1.bf16.msra.mxu0 0
      %490 = vmatprep.subr.bf16.mxu0 0
      %491 = vmatpush1.bf16.msra.mxu0 0
      %492 = vmatprep.subr.bf16.mxu0 0
      %493 = vmatpush1.bf16.msra.mxu0 0
      %494 = vmatprep.subr.bf16.mxu0 0
      %495 = vmatpush1.bf16.msra.mxu0 0
      %496 = vmatprep.subr.bf16.mxu0 0
      %497 = vmatpush1.bf16.msra.mxu0 0
      %498 = vmatprep.subr.bf16.mxu0 %v482
      %499 = vmatpush1.bf16.msra.mxu0 %v479
      %500 = vmatprep.subr.bf16.mxu0 0
      %501 = vmatpush2.bf16.msra.mxu0 0
      %502 = vmatprep.subr.bf16.mxu0 0
      %503 = vmatpush2.bf16.msra.mxu0 0
      %504 = vmatprep.subr.bf16.mxu0 0
      %505 = vmatpush2.bf16.msra.mxu0 0
      %506 = vmatprep.subr.bf16.mxu0 0
      %507 = vmatpush2.bf16.msra.mxu0 0
      %508 = vmatprep.subr.bf16.mxu0 0
      %509 = vmatpush2.bf16.msra.mxu0 0
      %510 = vmatprep.subr.bf16.mxu0 0
      %511 = vmatpush2.bf16.msra.mxu0 0
      %512 = vmatprep.subr.bf16.mxu0 0
      %513 = vmatpush2.bf16.msra.mxu0 0
      %514 = vmatprep.subr.bf16.mxu0 0
      %515 = vmatpush2.bf16.msra.mxu0 0
      %516 = vmatprep.mubr.bf16.mxu0 0
      %517 = vmatmul.mubr.bf16.gmra.mxu0 %v476
      %v518 = vpop.f32.mrf.mxu0
      %v519 = vadd.f32 %v469, %v518
      %v520 = vpop.f32.mrf.mxu0
      %v521 = vadd.f32 %v471, %v520
      %v522 = vpop.f32.mrf.mxu0
      %v523 = vpop.f32.mrf.mxu0
      %524 = vdwg.mxu0
      %s525 = scalar_lea.vmem %s2, 4
      %v526 = vld [vmem:[%s525] sm:$0x3]
      %v528 = vsel %vm423, %v526, 0
      %v531 = vsel %vm427, %v418, 0
      %v534 = vsel %vm427, %v419, 0
      %536 = vmatprep.subr.bf16.mxu0 0
      %537 = vmatpush1.bf16.msra.mxu0 0
      %538 = vmatprep.subr.bf16.mxu0 0
      %539 = vmatpush1.bf16.msra.mxu0 0
      %540 = vmatprep.subr.bf16.mxu0 0
      %541 = vmatpush1.bf16.msra.mxu0 0
      %542 = vmatprep.subr.bf16.mxu0 0
      %543 = vmatpush1.bf16.msra.mxu0 0
      %544 = vmatprep.subr.bf16.mxu0 0
      %545 = vmatpush1.bf16.msra.mxu0 0
      %546 = vmatprep.subr.bf16.mxu0 0
      %547 = vmatpush1.bf16.msra.mxu0 0
      %548 = vmatprep.subr.bf16.mxu0 0
      %549 = vmatpush1.bf16.msra.mxu0 0
      %550 = vmatprep.subr.bf16.mxu0 %v534
      %551 = vmatpush1.bf16.msra.mxu0 %v531
      %552 = vmatprep.subr.bf16.mxu0 0
      %553 = vmatpush2.bf16.msra.mxu0 0
      %554 = vmatprep.subr.bf16.mxu0 0
      %555 = vmatpush2.bf16.msra.mxu0 0
      %556 = vmatprep.subr.bf16.mxu0 0
      %557 = vmatpush2.bf16.msra.mxu0 0
      %558 = vmatprep.subr.bf16.mxu0 0
      %559 = vmatpush2.bf16.msra.mxu0 0
      %560 = vmatprep.subr.bf16.mxu0 0
      %561 = vmatpush2.bf16.msra.mxu0 0
      %562 = vmatprep.subr.bf16.mxu0 0
      %563 = vmatpush2.bf16.msra.mxu0 0
      %564 = vmatprep.subr.bf16.mxu0 0
      %565 = vmatpush2.bf16.msra.mxu0 0
      %566 = vmatprep.subr.bf16.mxu0 0
      %567 = vmatpush2.bf16.msra.mxu0 0
      %568 = vmatprep.mubr.bf16.mxu0 0
      %569 = vmatmul.mubr.bf16.gmra.mxu0 %v528
      %v570 = vpop.f32.mrf.mxu0
      %v571 = vadd.f32 0.0, %v570
      %v572 = vpop.f32.mrf.mxu0
      %v573 = vadd.f32 0.0, %v572
      %v574 = vpop.f32.mrf.mxu0
      %v575 = vpop.f32.mrf.mxu0
      %576 = vdwg.mxu0
      %v577 = vadd.f32 %v519, %v571
      %v578 = vadd.f32 %v521, %v573
      %s579 = scalar_lea.vmem %s2, 6
      %v580 = vld [vmem:[%s579] sm:$0x3]
      %583 = vrot.lane.b32.xlu0 %v389, 112
      %v584 = vpop.permute.xlu0 %583
      %585 = vrot.lane.b32.xlu0 %v390, 112
      %v586 = vpop.permute.xlu0 %585
      %vm587 = vcmask 916480
      %v588 = vsel %vm587, %v584, %v586
      %v590 = vsel %vm423, %v580, 0
      %v593 = vsel %vm427, %v588, 0
      %v596 = vsel %vm427, %v586, 0
      %598 = vmatprep.subr.bf16.mxu0 0
      %599 = vmatpush1.bf16.msra.mxu0 0
      %600 = vmatprep.subr.bf16.mxu0 0
      %601 = vmatpush1.bf16.msra.mxu0 0
      %602 = vmatprep.subr.bf16.mxu0 0
      %603 = vmatpush1.bf16.msra.mxu0 0
      %604 = vmatprep.subr.bf16.mxu0 0
      %605 = vmatpush1.bf16.msra.mxu0 0
      %606 = vmatprep.subr.bf16.mxu0 0
      %607 = vmatpush1.bf16.msra.mxu0 0
      %608 = vmatprep.subr.bf16.mxu0 0
      %609 = vmatpush1.bf16.msra.mxu0 0
      %610 = vmatprep.subr.bf16.mxu0 0
      %611 = vmatpush1.bf16.msra.mxu0 0
      %612 = vmatprep.subr.bf16.mxu0 %v596
      %613 = vmatpush1.bf16.msra.mxu0 %v593
      %614 = vmatprep.subr.bf16.mxu0 0
      %615 = vmatpush2.bf16.msra.mxu0 0
      %616 = vmatprep.subr.bf16.mxu0 0
      %617 = vmatpush2.bf16.msra.mxu0 0
      %618 = vmatprep.subr.bf16.mxu0 0
      %619 = vmatpush2.bf16.msra.mxu0 0
      %620 = vmatprep.subr.bf16.mxu0 0
      %621 = vmatpush2.bf16.msra.mxu0 0
      %622 = vmatprep.subr.bf16.mxu0 0
      %623 = vmatpush2.bf16.msra.mxu0 0
      %624 = vmatprep.subr.bf16.mxu0 0
      %625 = vmatpush2.bf16.msra.mxu0 0
      %626 = vmatprep.subr.bf16.mxu0 0
      %627 = vmatpush2.bf16.msra.mxu0 0
      %628 = vmatprep.subr.bf16.mxu0 0
      %629 = vmatpush2.bf16.msra.mxu0 0
      %630 = vmatprep.mubr.bf16.mxu0 0
      %631 = vmatmul.mubr.bf16.gmra.mxu0 %v590
      %v632 = vpop.f32.mrf.mxu0
      %v633 = vadd.f32 0.0, %v632
      %v634 = vpop.f32.mrf.mxu0
      %v635 = vadd.f32 0.0, %v634
      %v636 = vpop.f32.mrf.mxu0
      %v637 = vpop.f32.mrf.mxu0
      %638 = vdwg.mxu0
      %v639 = vadd.f32 %v577, %v633
      %v640 = vadd.f32 %v578, %v635
      %s641 = scalar_lea.vmem %s2, 8
      %v642 = vld [vmem:[%s641] sm:$0x3]
      %643 = vrot.lane.b32.xlu0 %v357, 112
      %v644 = vpop.permute.xlu0 %643
      %645 = vrot.lane.b32.xlu0 %v358, 112
      %v646 = vpop.permute.xlu0 %645
      %v647 = vsel %vm587, %v644, %v646
      %v649 = vsel %vm423, %v642, 0
      %v652 = vsel %vm427, %v647, 0
      %v655 = vsel %vm427, %v646, 0
      %657 = vmatprep.subr.bf16.mxu0 0
      %658 = vmatpush1.bf16.msra.mxu0 0
      %659 = vmatprep.subr.bf16.mxu0 0
      %660 = vmatpush1.bf16.msra.mxu0 0
      %661 = vmatprep.subr.bf16.mxu0 0
      %662 = vmatpush1.bf16.msra.mxu0 0
      %663 = vmatprep.subr.bf16.mxu0 0
      %664 = vmatpush1.bf16.msra.mxu0 0
      %665 = vmatprep.subr.bf16.mxu0 0
      %666 = vmatpush1.bf16.msra.mxu0 0
      %667 = vmatprep.subr.bf16.mxu0 0
      %668 = vmatpush1.bf16.msra.mxu0 0
      %669 = vmatprep.subr.bf16.mxu0 0
      %670 = vmatpush1.bf16.msra.mxu0 0
      %671 = vmatprep.subr.bf16.mxu0 %v655
      %672 = vmatpush1.bf16.msra.mxu0 %v652
      %673 = vmatprep.subr.bf16.mxu0 0
      %674 = vmatpush2.bf16.msra.mxu0 0
      %675 = vmatprep.subr.bf16.mxu0 0
      %676 = vmatpush2.bf16.msra.mxu0 0
      %677 = vmatprep.subr.bf16.mxu0 0
      %678 = vmatpush2.bf16.msra.mxu0 0
      %679 = vmatprep.subr.bf16.mxu0 0
      %680 = vmatpush2.bf16.msra.mxu0 0
      %681 = vmatprep.subr.bf16.mxu0 0
      %682 = vmatpush2.bf16.msra.mxu0 0
      %683 = vmatprep.subr.bf16.mxu0 0
      %684 = vmatpush2.bf16.msra.mxu0 0
      %685 = vmatprep.subr.bf16.mxu0 0
      %686 = vmatpush2.bf16.msra.mxu0 0
      %687 = vmatprep.subr.bf16.mxu0 0
      %688 = vmatpush2.bf16.msra.mxu0 0
      %689 = vmatprep.mubr.bf16.mxu0 0
      %690 = vmatmul.mubr.bf16.gmra.mxu0 %v649
      %v691 = vpop.f32.mrf.mxu0
      %v692 = vadd.f32 0.0, %v691
      %v693 = vpop.f32.mrf.mxu0
      %v694 = vadd.f32 0.0, %v693
      %v695 = vpop.f32.mrf.mxu0
      %v696 = vpop.f32.mrf.mxu0
      %697 = vdwg.mxu0
      %v698 = vadd.f32 %v639, %v692
      %v699 = vadd.f32 %v640, %v694
      %s700 = scalar_lea.vmem %s2, 10
      %v701 = vld [vmem:[%s700] sm:$0x3]
      %704 = vrot.lane.b32.xlu0 %v418, 112
      %v705 = vpop.permute.xlu0 %704
      %706 = vrot.lane.b32.xlu0 %v419, 112
      %v707 = vpop.permute.xlu0 %706
      %v708 = vsel %vm587, %v705, %v707
      %v710 = vsel %vm423, %v701, 0
      %v713 = vsel %vm427, %v708, 0
      %v716 = vsel %vm427, %v707, 0
      %718 = vmatprep.subr.bf16.mxu0 0
      %719 = vmatpush1.bf16.msra.mxu0 0
      %720 = vmatprep.subr.bf16.mxu0 0
      %721 = vmatpush1.bf16.msra.mxu0 0
      %722 = vmatprep.subr.bf16.mxu0 0
      %723 = vmatpush1.bf16.msra.mxu0 0
      %724 = vmatprep.subr.bf16.mxu0 0
      %725 = vmatpush1.bf16.msra.mxu0 0
      %726 = vmatprep.subr.bf16.mxu0 0
      %727 = vmatpush1.bf16.msra.mxu0 0
      %728 = vmatprep.subr.bf16.mxu0 0
      %729 = vmatpush1.bf16.msra.mxu0 0
      %730 = vmatprep.subr.bf16.mxu0 0
      %731 = vmatpush1.bf16.msra.mxu0 0
      %732 = vmatprep.subr.bf16.mxu0 %v716
      %733 = vmatpush1.bf16.msra.mxu0 %v713
      %734 = vmatprep.subr.bf16.mxu0 0
      %735 = vmatpush2.bf16.msra.mxu0 0
      %736 = vmatprep.subr.bf16.mxu0 0
      %737 = vmatpush2.bf16.msra.mxu0 0
      %738 = vmatprep.subr.bf16.mxu0 0
      %739 = vmatpush2.bf16.msra.mxu0 0
      %740 = vmatprep.subr.bf16.mxu0 0
      %741 = vmatpush2.bf16.msra.mxu0 0
      %742 = vmatprep.subr.bf16.mxu0 0
      %743 = vmatpush2.bf16.msra.mxu0 0
      %744 = vmatprep.subr.bf16.mxu0 0
      %745 = vmatpush2.bf16.msra.mxu0 0
      %746 = vmatprep.subr.bf16.mxu0 0
      %747 = vmatpush2.bf16.msra.mxu0 0
      %748 = vmatprep.subr.bf16.mxu0 0
      %749 = vmatpush2.bf16.msra.mxu0 0
      %750 = vmatprep.mubr.bf16.mxu0 0
      %751 = vmatmul.mubr.bf16.gmra.mxu0 %v710
      %v752 = vpop.f32.mrf.mxu0
      %v753 = vadd.f32 0.0, %v752
      %v754 = vpop.f32.mrf.mxu0
      %v755 = vadd.f32 0.0, %v754
      %v756 = vpop.f32.mrf.mxu0
      %v757 = vpop.f32.mrf.mxu0
      %758 = vdwg.mxu0
      %v759 = vadd.f32 %v698, %v753
      %v760 = vadd.f32 %v699, %v755
      %s761 = scalar_lea.vmem %s2, 12
      %v762 = vld [vmem:[%s761] sm:$0x3]
      %763 = vrot.lane.b32.xlu0 %v389, 96
      %v764 = vpop.permute.xlu0 %763
      %765 = vrot.lane.b32.xlu0 %v390, 96
      %v766 = vpop.permute.xlu0 %765
      %vm767 = vcmask 785408
      %v768 = vsel %vm767, %v764, %v766
      %v770 = vsel %vm423, %v762, 0
      %v773 = vsel %vm427, %v768, 0
      %v776 = vsel %vm427, %v766, 0
      %778 = vmatprep.subr.bf16.mxu0 0
      %779 = vmatpush1.bf16.msra.mxu0 0
      %780 = vmatprep.subr.bf16.mxu0 0
      %781 = vmatpush1.bf16.msra.mxu0 0
      %782 = vmatprep.subr.bf16.mxu0 0
      %783 = vmatpush1.bf16.msra.mxu0 0
      %784 = vmatprep.subr.bf16.mxu0 0
      %785 = vmatpush1.bf16.msra.mxu0 0
      %786 = vmatprep.subr.bf16.mxu0 0
      %787 = vmatpush1.bf16.msra.mxu0 0
      %788 = vmatprep.subr.bf16.mxu0 0
      %789 = vmatpush1.bf16.msra.mxu0 0
      %790 = vmatprep.subr.bf16.mxu0 0
      %791 = vmatpush1.bf16.msra.mxu0 0
      %792 = vmatprep.subr.bf16.mxu0 %v776
      %793 = vmatpush1.bf16.msra.mxu0 %v773
      %794 = vmatprep.subr.bf16.mxu0 0
      %795 = vmatpush2.bf16.msra.mxu0 0
      %796 = vmatprep.subr.bf16.mxu0 0
      %797 = vmatpush2.bf16.msra.mxu0 0
      %798 = vmatprep.subr.bf16.mxu0 0
      %799 = vmatpush2.bf16.msra.mxu0 0
      %800 = vmatprep.subr.bf16.mxu0 0
      %801 = vmatpush2.bf16.msra.mxu0 0
      %802 = vmatprep.subr.bf16.mxu0 0
      %803 = vmatpush2.bf16.msra.mxu0 0
      %804 = vmatprep.subr.bf16.mxu0 0
      %805 = vmatpush2.bf16.msra.mxu0 0
      %806 = vmatprep.subr.bf16.mxu0 0
      %807 = vmatpush2.bf16.msra.mxu0 0
      %808 = vmatprep.subr.bf16.mxu0 0
      %809 = vmatpush2.bf16.msra.mxu0 0
      %810 = vmatprep.mubr.bf16.mxu0 0
      %811 = vmatmul.mubr.bf16.gmra.mxu0 %v770
      %v812 = vpop.f32.mrf.mxu0
      %v813 = vadd.f32 0.0, %v812
      %v814 = vpop.f32.mrf.mxu0
      %v815 = vadd.f32 0.0, %v814
      %v816 = vpop.f32.mrf.mxu0
      %v817 = vpop.f32.mrf.mxu0
      %818 = vdwg.mxu0
      %v819 = vadd.f32 %v759, %v813
      %v820 = vadd.f32 %v760, %v815
      %s821 = scalar_lea.vmem %s2, 14
      %v822 = vld [vmem:[%s821] sm:$0x3]
      %823 = vrot.lane.b32.xlu0 %v357, 96
      %v824 = vpop.permute.xlu0 %823
      %825 = vrot.lane.b32.xlu0 %v358, 96
      %v826 = vpop.permute.xlu0 %825
      %v827 = vsel %vm767, %v824, %v826
      %v829 = vsel %vm423, %v822, 0
      %v832 = vsel %vm427, %v827, 0
      %v835 = vsel %vm427, %v826, 0
      %837 = vmatprep.subr.bf16.mxu0 0
      %838 = vmatpush1.bf16.msra.mxu0 0
      %839 = vmatprep.subr.bf16.mxu0 0
      %840 = vmatpush1.bf16.msra.mxu0 0
      %841 = vmatprep.subr.bf16.mxu0 0
      %842 = vmatpush1.bf16.msra.mxu0 0
      %843 = vmatprep.subr.bf16.mxu0 0
      %844 = vmatpush1.bf16.msra.mxu0 0
      %845 = vmatprep.subr.bf16.mxu0 0
      %846 = vmatpush1.bf16.msra.mxu0 0
      %847 = vmatprep.subr.bf16.mxu0 0
      %848 = vmatpush1.bf16.msra.mxu0 0
      %849 = vmatprep.subr.bf16.mxu0 0
      %850 = vmatpush1.bf16.msra.mxu0 0
      %851 = vmatprep.subr.bf16.mxu0 %v835
      %852 = vmatpush1.bf16.msra.mxu0 %v832
      %853 = vmatprep.subr.bf16.mxu0 0
      %854 = vmatpush2.bf16.msra.mxu0 0
      %855 = vmatprep.subr.bf16.mxu0 0
      %856 = vmatpush2.bf16.msra.mxu0 0
      %857 = vmatprep.subr.bf16.mxu0 0
      %858 = vmatpush2.bf16.msra.mxu0 0
      %859 = vmatprep.subr.bf16.mxu0 0
      %860 = vmatpush2.bf16.msra.mxu0 0
      %861 = vmatprep.subr.bf16.mxu0 0
      %862 = vmatpush2.bf16.msra.mxu0 0
      %863 = vmatprep.subr.bf16.mxu0 0
      %864 = vmatpush2.bf16.msra.mxu0 0
      %865 = vmatprep.subr.bf16.mxu0 0
      %866 = vmatpush2.bf16.msra.mxu0 0
      %867 = vmatprep.subr.bf16.mxu0 0
      %868 = vmatpush2.bf16.msra.mxu0 0
      %869 = vmatprep.mubr.bf16.mxu0 0
      %870 = vmatmul.mubr.bf16.gmra.mxu0 %v829
      %v871 = vpop.f32.mrf.mxu0
      %v872 = vadd.f32 0.0, %v871
      %v873 = vpop.f32.mrf.mxu0
      %v874 = vadd.f32 0.0, %v873
      %v875 = vpop.f32.mrf.mxu0
      %v876 = vpop.f32.mrf.mxu0
      %877 = vdwg.mxu0
      %v878 = vadd.f32 %v819, %v872
      %v879 = vadd.f32 %v820, %v874
      %s880 = scalar_lea.vmem %s2, 16
      %v881 = vld [vmem:[%s880] sm:$0x3]
      %882 = vrot.lane.b32.xlu0 %v418, 96
      %v883 = vpop.permute.xlu0 %882
      %884 = vrot.lane.b32.xlu0 %v419, 96
      %v885 = vpop.permute.xlu0 %884
      %v886 = vsel %vm767, %v883, %v885
      %v888 = vsel %vm423, %v881, 0
      %v891 = vsel %vm427, %v886, 0
      %v894 = vsel %vm427, %v885, 0
      %896 = vmatprep.subr.bf16.mxu0 0
      %897 = vmatpush1.bf16.msra.mxu0 0
      %898 = vmatprep.subr.bf16.mxu0 0
      %899 = vmatpush1.bf16.msra.mxu0 0
      %900 = vmatprep.subr.bf16.mxu0 0
      %901 = vmatpush1.bf16.msra.mxu0 0
      %902 = vmatprep.subr.bf16.mxu0 0
      %903 = vmatpush1.bf16.msra.mxu0 0
      %904 = vmatprep.subr.bf16.mxu0 0
      %905 = vmatpush1.bf16.msra.mxu0 0
      %906 = vmatprep.subr.bf16.mxu0 0
      %907 = vmatpush1.bf16.msra.mxu0 0
      %908 = vmatprep.subr.bf16.mxu0 0
      %909 = vmatpush1.bf16.msra.mxu0 0
      %910 = vmatprep.subr.bf16.mxu0 %v894
      %911 = vmatpush1.bf16.msra.mxu0 %v891
      %912 = vmatprep.subr.bf16.mxu0 0
      %913 = vmatpush2.bf16.msra.mxu0 0
      %914 = vmatprep.subr.bf16.mxu0 0
      %915 = vmatpush2.bf16.msra.mxu0 0
      %916 = vmatprep.subr.bf16.mxu0 0
      %917 = vmatpush2.bf16.msra.mxu0 0
      %918 = vmatprep.subr.bf16.mxu0 0
      %919 = vmatpush2.bf16.msra.mxu0 0
      %920 = vmatprep.subr.bf16.mxu0 0
      %921 = vmatpush2.bf16.msra.mxu0 0
      %922 = vmatprep.subr.bf16.mxu0 0
      %923 = vmatpush2.bf16.msra.mxu0 0
      %924 = vmatprep.subr.bf16.mxu0 0
      %925 = vmatpush2.bf16.msra.mxu0 0
      %926 = vmatprep.subr.bf16.mxu0 0
      %927 = vmatpush2.bf16.msra.mxu0 0
      %928 = vmatprep.mubr.bf16.mxu0 0
      %929 = vmatmul.mubr.bf16.gmra.mxu0 %v888
      %v930 = vpop.f32.mrf.mxu0
      %v931 = vadd.f32 0.0, %v930
      %v932 = vpop.f32.mrf.mxu0
      %v933 = vadd.f32 0.0, %v932
      %v934 = vpop.f32.mrf.mxu0
      %v935 = vpop.f32.mrf.mxu0
      %936 = vdwg.mxu0
      %v937 = vadd.f32 %v878, %v931
      %v938 = vadd.f32 %v879, %v933
      %v939 = vld [vmem:[%s3] sm:$0xf]
      %941 = vset.pattern.permute.xlu0 0
      %942 = vperm.xlu0 %941, %v939
      %v943 = vpop.permute.xlu0 %942
      %v945 = vadd.f32 %v937, %v943
      %v946 = vadd.f32 %v938, %v943
      %v947 = vmax.f32 %v945, 0.0
      %v948 = vmax.f32 %v946, 0.0
      %vm949 = vcmp.lt.s32.totalorder %v327, 16
      %vm950 = vcmp.lt.s32.totalorder %v328, 16
      %p951 = scmp.eq.s32.totalorder %s22, 0
      %s952 = scalar_select %p951, 1, 0
      %v953 = vstv %s952
      %vm954 = vcmp.eq.s32.totalorder %v953, 1
      %vm955 = vmand %vm949, %vm954
      %vm956 = vmand %vm950, %vm954
      %vm957 = vcmp.ge.s32.totalorder %v327, 144
      %vm958 = vcmp.ge.s32.totalorder %v328, 144
      %p959 = scmp.eq.s32.totalorder %s22, 1
      %s960 = scalar_select %p959, 1, 0
      %v961 = vstv %s960
      %vm962 = vcmp.eq.s32.totalorder %v961, 1
      %vm963 = vmand %vm957, %vm962
      %vm964 = vmand %vm958, %vm962
      %vm965 = vmor %vm955, %vm963
      %vm966 = vmor %vm956, %vm964
      %v967 = vsel %vm965, 1, 0
      %v968 = vsel %vm966, 1, 0
      %vm969 = vcmp.eq.s32.totalorder %v967, 1
      %vm970 = vcmp.eq.s32.totalorder %v968, 1
      %v971 = vsel %vm969, 0.0, %v947
      %v972 = vsel %vm970, 0.0, %v948
      %v973 = vpack.c.bf16 %v971, %v971
      %v974 = vpack.c.bf16 %v972, %v972
      %977 = vrot.lane.b32.xlu0 %v973, 1
      %v978 = vpop.permute.xlu0 %977
      %979 = vrot.lane.b32.xlu0 %v974, 1
      %v980 = vpop.permute.xlu0 %979
      %v981 = vsel %vm365, %v978, %v980
      %v984 = vsel %vm368, 0, %v978
      %v986 = vsel %vm387, 0, %v984
      %v987 = vsel %vm388, 0, %v981
      %988 = vrot.lane.b32.xlu0 %v973, 127
      %v989 = vpop.permute.xlu0 %988
      %990 = vrot.lane.b32.xlu0 %v974, 127
      %v991 = vpop.permute.xlu0 %990
      %v992 = vsel %vm395, %v989, %v991
      %vm994 = vcmask 252928
      %v996 = vsel %vm994, %v991, 0
      %v998 = vsel %vm416, 0, %v992
      %v999 = vsel %vm417, 0, %v996
      %v1000 = vld [vmem:[%s4] sm:$0x3]
      %s1001 = scalar_lea.vmem %s4, 2
      %v1002 = vld [vmem:[%s1001] sm:$0x3]
      %v1004 = vsel %vm423, %v1002, 0
      %v1007 = vsel %vm427, %v973, 0
      %1009 = vmatprep.subr.bf16.mxu0 0
      %1010 = vmatpush1.bf16.msra.mxu0 0
      %1011 = vmatprep.subr.bf16.mxu0 0
      %1012 = vmatpush1.bf16.msra.mxu0 0
      %1013 = vmatprep.subr.bf16.mxu0 0
      %1014 = vmatpush1.bf16.msra.mxu0 0
      %1015 = vmatprep.subr.bf16.mxu0 0
      %1016 = vmatpush1.bf16.msra.mxu0 0
      %1017 = vmatprep.subr.bf16.mxu0 0
      %1018 = vmatpush1.bf16.msra.mxu0 0
      %1019 = vmatprep.subr.bf16.mxu0 0
      %1020 = vmatpush1.bf16.msra.mxu0 0
      %1021 = vmatprep.subr.bf16.mxu0 0
      %1022 = vmatpush1.bf16.msra.mxu0 0
      %1023 = vmatprep.subr.bf16.mxu0 0
      %1024 = vmatpush1.bf16.msra.mxu0 %v1007
      %1025 = vmatprep.subr.bf16.mxu0 0
      %1026 = vmatpush2.bf16.msra.mxu0 0
      %1027 = vmatprep.subr.bf16.mxu0 0
      %1028 = vmatpush2.bf16.msra.mxu0 0
      %1029 = vmatprep.subr.bf16.mxu0 0
      %1030 = vmatpush2.bf16.msra.mxu0 0
      %1031 = vmatprep.subr.bf16.mxu0 0
      %1032 = vmatpush2.bf16.msra.mxu0 0
      %1033 = vmatprep.subr.bf16.mxu0 0
      %1034 = vmatpush2.bf16.msra.mxu0 0
      %1035 = vmatprep.subr.bf16.mxu0 0
      %1036 = vmatpush2.bf16.msra.mxu0 0
      %1037 = vmatprep.subr.bf16.mxu0 0
      %1038 = vmatpush2.bf16.msra.mxu0 0
      %1039 = vmatprep.subr.bf16.mxu0 0
      %1040 = vmatpush2.bf16.msra.mxu0 0
      %1041 = vmatprep.mubr.bf16.mxu0 0
      %1042 = vmatmul.mubr.bf16.gmra.mxu0 %v1004
      %v1043 = vpop.f32.mrf.mxu0
      %v1044 = vadd.f32 0.0, %v1043
      %v1045 = vpop.f32.mrf.mxu0
      %v1046 = vpop.f32.mrf.mxu0
      %v1047 = vpop.f32.mrf.mxu0
      %1048 = vdwg.mxu0
      %v1050 = vsel %vm423, %v1000, 0
      %v1053 = vsel %vm427, %v986, 0
      %1055 = vmatprep.subr.bf16.mxu0 0
      %1056 = vmatpush1.bf16.msra.mxu0 0
      %1057 = vmatprep.subr.bf16.mxu0 0
      %1058 = vmatpush1.bf16.msra.mxu0 0
      %1059 = vmatprep.subr.bf16.mxu0 0
      %1060 = vmatpush1.bf16.msra.mxu0 0
      %1061 = vmatprep.subr.bf16.mxu0 0
      %1062 = vmatpush1.bf16.msra.mxu0 0
      %1063 = vmatprep.subr.bf16.mxu0 0
      %1064 = vmatpush1.bf16.msra.mxu0 0
      %1065 = vmatprep.subr.bf16.mxu0 0
      %1066 = vmatpush1.bf16.msra.mxu0 0
      %1067 = vmatprep.subr.bf16.mxu0 0
      %1068 = vmatpush1.bf16.msra.mxu0 0
      %1069 = vmatprep.subr.bf16.mxu0 0
      %1070 = vmatpush1.bf16.msra.mxu0 %v1053
      %1071 = vmatprep.subr.bf16.mxu0 0
      %1072 = vmatpush2.bf16.msra.mxu0 0
      %1073 = vmatprep.subr.bf16.mxu0 0
      %1074 = vmatpush2.bf16.msra.mxu0 0
      %1075 = vmatprep.subr.bf16.mxu0 0
      %1076 = vmatpush2.bf16.msra.mxu0 0
      %1077 = vmatprep.subr.bf16.mxu0 0
      %1078 = vmatpush2.bf16.msra.mxu0 0
      %1079 = vmatprep.subr.bf16.mxu0 0
      %1080 = vmatpush2.bf16.msra.mxu0 0
      %1081 = vmatprep.subr.bf16.mxu0 0
      %1082 = vmatpush2.bf16.msra.mxu0 0
      %1083 = vmatprep.subr.bf16.mxu0 0
      %1084 = vmatpush2.bf16.msra.mxu0 0
      %1085 = vmatprep.subr.bf16.mxu0 0
      %1086 = vmatpush2.bf16.msra.mxu0 0
      %1087 = vmatprep.mubr.bf16.mxu0 0
      %1088 = vmatmul.mubr.bf16.gmra.mxu0 %v1050
      %v1089 = vpop.f32.mrf.mxu0
      %v1090 = vadd.f32 %v1044, %v1089
      %v1091 = vpop.f32.mrf.mxu0
      %v1092 = vpop.f32.mrf.mxu0
      %v1093 = vpop.f32.mrf.mxu0
      %1094 = vdwg.mxu0
      %s1095 = scalar_lea.vmem %s4, 4
      %v1096 = vld [vmem:[%s1095] sm:$0x3]
      %v1098 = vsel %vm423, %v1096, 0
      %v1101 = vsel %vm427, %v998, 0
      %1103 = vmatprep.subr.bf16.mxu0 0
      %1104 = vmatpush1.bf16.msra.mxu0 0
      %1105 = vmatprep.subr.bf16.mxu0 0
      %1106 = vmatpush1.bf16.msra.mxu0 0
      %1107 = vmatprep.subr.bf16.mxu0 0
      %1108 = vmatpush1.bf16.msra.mxu0 0
      %1109 = vmatprep.subr.bf16.mxu0 0
      %1110 = vmatpush1.bf16.msra.mxu0 0
      %1111 = vmatprep.subr.bf16.mxu0 0
      %1112 = vmatpush1.bf16.msra.mxu0 0
      %1113 = vmatprep.subr.bf16.mxu0 0
      %1114 = vmatpush1.bf16.msra.mxu0 0
      %1115 = vmatprep.subr.bf16.mxu0 0
      %1116 = vmatpush1.bf16.msra.mxu0 0
      %1117 = vmatprep.subr.bf16.mxu0 0
      %1118 = vmatpush1.bf16.msra.mxu0 %v1101
      %1119 = vmatprep.subr.bf16.mxu0 0
      %1120 = vmatpush2.bf16.msra.mxu0 0
      %1121 = vmatprep.subr.bf16.mxu0 0
      %1122 = vmatpush2.bf16.msra.mxu0 0
      %1123 = vmatprep.subr.bf16.mxu0 0
      %1124 = vmatpush2.bf16.msra.mxu0 0
      %1125 = vmatprep.subr.bf16.mxu0 0
      %1126 = vmatpush2.bf16.msra.mxu0 0
      %1127 = vmatprep.subr.bf16.mxu0 0
      %1128 = vmatpush2.bf16.msra.mxu0 0
      %1129 = vmatprep.subr.bf16.mxu0 0
      %1130 = vmatpush2.bf16.msra.mxu0 0
      %1131 = vmatprep.subr.bf16.mxu0 0
      %1132 = vmatpush2.bf16.msra.mxu0 0
      %1133 = vmatprep.subr.bf16.mxu0 0
      %1134 = vmatpush2.bf16.msra.mxu0 0
      %1135 = vmatprep.mubr.bf16.mxu0 0
      %1136 = vmatmul.mubr.bf16.gmra.mxu0 %v1098
      %v1137 = vpop.f32.mrf.mxu0
      %v1138 = vadd.f32 0.0, %v1137
      %v1139 = vpop.f32.mrf.mxu0
      %v1140 = vpop.f32.mrf.mxu0
      %v1141 = vpop.f32.mrf.mxu0
      %1142 = vdwg.mxu0
      %v1143 = vadd.f32 %v1090, %v1138
      %s1144 = scalar_lea.vmem %s4, 6
      %v1145 = vld [vmem:[%s1144] sm:$0x3]
      %1148 = vrot.lane.b32.xlu0 %v986, 112
      %v1149 = vpop.permute.xlu0 %1148
      %1150 = vrot.lane.b32.xlu0 %v987, 112
      %v1151 = vpop.permute.xlu0 %1150
      %v1152 = vsel %vm587, %v1149, %v1151
      %v1154 = vsel %vm423, %v1145, 0
      %v1157 = vsel %vm427, %v1152, 0
      %1159 = vmatprep.subr.bf16.mxu0 0
      %1160 = vmatpush1.bf16.msra.mxu0 0
      %1161 = vmatprep.subr.bf16.mxu0 0
      %1162 = vmatpush1.bf16.msra.mxu0 0
      %1163 = vmatprep.subr.bf16.mxu0 0
      %1164 = vmatpush1.bf16.msra.mxu0 0
      %1165 = vmatprep.subr.bf16.mxu0 0
      %1166 = vmatpush1.bf16.msra.mxu0 0
      %1167 = vmatprep.subr.bf16.mxu0 0
      %1168 = vmatpush1.bf16.msra.mxu0 0
      %1169 = vmatprep.subr.bf16.mxu0 0
      %1170 = vmatpush1.bf16.msra.mxu0 0
      %1171 = vmatprep.subr.bf16.mxu0 0
      %1172 = vmatpush1.bf16.msra.mxu0 0
      %1173 = vmatprep.subr.bf16.mxu0 0
      %1174 = vmatpush1.bf16.msra.mxu0 %v1157
      %1175 = vmatprep.subr.bf16.mxu0 0
      %1176 = vmatpush2.bf16.msra.mxu0 0
      %1177 = vmatprep.subr.bf16.mxu0 0
      %1178 = vmatpush2.bf16.msra.mxu0 0
      %1179 = vmatprep.subr.bf16.mxu0 0
      %1180 = vmatpush2.bf16.msra.mxu0 0
      %1181 = vmatprep.subr.bf16.mxu0 0
      %1182 = vmatpush2.bf16.msra.mxu0 0
      %1183 = vmatprep.subr.bf16.mxu0 0
      %1184 = vmatpush2.bf16.msra.mxu0 0
      %1185 = vmatprep.subr.bf16.mxu0 0
      %1186 = vmatpush2.bf16.msra.mxu0 0
      %1187 = vmatprep.subr.bf16.mxu0 0
      %1188 = vmatpush2.bf16.msra.mxu0 0
      %1189 = vmatprep.subr.bf16.mxu0 0
      %1190 = vmatpush2.bf16.msra.mxu0 0
      %1191 = vmatprep.mubr.bf16.mxu0 0
      %1192 = vmatmul.mubr.bf16.gmra.mxu0 %v1154
      %v1193 = vpop.f32.mrf.mxu0
      %v1194 = vadd.f32 0.0, %v1193
      %v1195 = vpop.f32.mrf.mxu0
      %v1196 = vpop.f32.mrf.mxu0
      %v1197 = vpop.f32.mrf.mxu0
      %1198 = vdwg.mxu0
      %v1199 = vadd.f32 %v1143, %v1194
      %s1200 = scalar_lea.vmem %s4, 8
      %v1201 = vld [vmem:[%s1200] sm:$0x3]
      %1202 = vrot.lane.b32.xlu0 %v973, 112
      %v1203 = vpop.permute.xlu0 %1202
      %1204 = vrot.lane.b32.xlu0 %v974, 112
      %v1205 = vpop.permute.xlu0 %1204
      %v1206 = vsel %vm587, %v1203, %v1205
      %v1208 = vsel %vm423, %v1201, 0
      %v1211 = vsel %vm427, %v1206, 0
      %1213 = vmatprep.subr.bf16.mxu0 0
      %1214 = vmatpush1.bf16.msra.mxu0 0
      %1215 = vmatprep.subr.bf16.mxu0 0
      %1216 = vmatpush1.bf16.msra.mxu0 0
      %1217 = vmatprep.subr.bf16.mxu0 0
      %1218 = vmatpush1.bf16.msra.mxu0 0
      %1219 = vmatprep.subr.bf16.mxu0 0
      %1220 = vmatpush1.bf16.msra.mxu0 0
      %1221 = vmatprep.subr.bf16.mxu0 0
      %1222 = vmatpush1.bf16.msra.mxu0 0
      %1223 = vmatprep.subr.bf16.mxu0 0
      %1224 = vmatpush1.bf16.msra.mxu0 0
      %1225 = vmatprep.subr.bf16.mxu0 0
      %1226 = vmatpush1.bf16.msra.mxu0 0
      %1227 = vmatprep.subr.bf16.mxu0 0
      %1228 = vmatpush1.bf16.msra.mxu0 %v1211
      %1229 = vmatprep.subr.bf16.mxu0 0
      %1230 = vmatpush2.bf16.msra.mxu0 0
      %1231 = vmatprep.subr.bf16.mxu0 0
      %1232 = vmatpush2.bf16.msra.mxu0 0
      %1233 = vmatprep.subr.bf16.mxu0 0
      %1234 = vmatpush2.bf16.msra.mxu0 0
      %1235 = vmatprep.subr.bf16.mxu0 0
      %1236 = vmatpush2.bf16.msra.mxu0 0
      %1237 = vmatprep.subr.bf16.mxu0 0
      %1238 = vmatpush2.bf16.msra.mxu0 0
      %1239 = vmatprep.subr.bf16.mxu0 0
      %1240 = vmatpush2.bf16.msra.mxu0 0
      %1241 = vmatprep.subr.bf16.mxu0 0
      %1242 = vmatpush2.bf16.msra.mxu0 0
      %1243 = vmatprep.subr.bf16.mxu0 0
      %1244 = vmatpush2.bf16.msra.mxu0 0
      %1245 = vmatprep.mubr.bf16.mxu0 0
      %1246 = vmatmul.mubr.bf16.gmra.mxu0 %v1208
      %v1247 = vpop.f32.mrf.mxu0
      %v1248 = vadd.f32 0.0, %v1247
      %v1249 = vpop.f32.mrf.mxu0
      %v1250 = vpop.f32.mrf.mxu0
      %v1251 = vpop.f32.mrf.mxu0
      %1252 = vdwg.mxu0
      %v1253 = vadd.f32 %v1199, %v1248
      %s1254 = scalar_lea.vmem %s4, 10
      %v1255 = vld [vmem:[%s1254] sm:$0x3]
      %1258 = vrot.lane.b32.xlu0 %v998, 112
      %v1259 = vpop.permute.xlu0 %1258
      %1260 = vrot.lane.b32.xlu0 %v999, 112
      %v1261 = vpop.permute.xlu0 %1260
      %v1262 = vsel %vm587, %v1259, %v1261
      %v1264 = vsel %vm423, %v1255, 0
      %v1267 = vsel %vm427, %v1262, 0
      %1269 = vmatprep.subr.bf16.mxu0 0
      %1270 = vmatpush1.bf16.msra.mxu0 0
      %1271 = vmatprep.subr.bf16.mxu0 0
      %1272 = vmatpush1.bf16.msra.mxu0 0
      %1273 = vmatprep.subr.bf16.mxu0 0
      %1274 = vmatpush1.bf16.msra.mxu0 0
      %1275 = vmatprep.subr.bf16.mxu0 0
      %1276 = vmatpush1.bf16.msra.mxu0 0
      %1277 = vmatprep.subr.bf16.mxu0 0
      %1278 = vmatpush1.bf16.msra.mxu0 0
      %1279 = vmatprep.subr.bf16.mxu0 0
      %1280 = vmatpush1.bf16.msra.mxu0 0
      %1281 = vmatprep.subr.bf16.mxu0 0
      %1282 = vmatpush1.bf16.msra.mxu0 0
      %1283 = vmatprep.subr.bf16.mxu0 0
      %1284 = vmatpush1.bf16.msra.mxu0 %v1267
      %1285 = vmatprep.subr.bf16.mxu0 0
      %1286 = vmatpush2.bf16.msra.mxu0 0
      %1287 = vmatprep.subr.bf16.mxu0 0
      %1288 = vmatpush2.bf16.msra.mxu0 0
      %1289 = vmatprep.subr.bf16.mxu0 0
      %1290 = vmatpush2.bf16.msra.mxu0 0
      %1291 = vmatprep.subr.bf16.mxu0 0
      %1292 = vmatpush2.bf16.msra.mxu0 0
      %1293 = vmatprep.subr.bf16.mxu0 0
      %1294 = vmatpush2.bf16.msra.mxu0 0
      %1295 = vmatprep.subr.bf16.mxu0 0
      %1296 = vmatpush2.bf16.msra.mxu0 0
      %1297 = vmatprep.subr.bf16.mxu0 0
      %1298 = vmatpush2.bf16.msra.mxu0 0
      %1299 = vmatprep.subr.bf16.mxu0 0
      %1300 = vmatpush2.bf16.msra.mxu0 0
      %1301 = vmatprep.mubr.bf16.mxu0 0
      %1302 = vmatmul.mubr.bf16.gmra.mxu0 %v1264
      %v1303 = vpop.f32.mrf.mxu0
      %v1304 = vadd.f32 0.0, %v1303
      %v1305 = vpop.f32.mrf.mxu0
      %v1306 = vpop.f32.mrf.mxu0
      %v1307 = vpop.f32.mrf.mxu0
      %1308 = vdwg.mxu0
      %v1309 = vadd.f32 %v1253, %v1304
      %s1310 = scalar_lea.vmem %s4, 12
      %v1311 = vld [vmem:[%s1310] sm:$0x3]
      %1312 = vrot.lane.b32.xlu0 %v986, 96
      %v1313 = vpop.permute.xlu0 %1312
      %1314 = vrot.lane.b32.xlu0 %v987, 96
      %v1315 = vpop.permute.xlu0 %1314
      %v1316 = vsel %vm767, %v1313, %v1315
      %v1318 = vsel %vm423, %v1311, 0
      %v1321 = vsel %vm427, %v1316, 0
      %1323 = vmatprep.subr.bf16.mxu0 0
      %1324 = vmatpush1.bf16.msra.mxu0 0
      %1325 = vmatprep.subr.bf16.mxu0 0
      %1326 = vmatpush1.bf16.msra.mxu0 0
      %1327 = vmatprep.subr.bf16.mxu0 0
      %1328 = vmatpush1.bf16.msra.mxu0 0
      %1329 = vmatprep.subr.bf16.mxu0 0
      %1330 = vmatpush1.bf16.msra.mxu0 0
      %1331 = vmatprep.subr.bf16.mxu0 0
      %1332 = vmatpush1.bf16.msra.mxu0 0
      %1333 = vmatprep.subr.bf16.mxu0 0
      %1334 = vmatpush1.bf16.msra.mxu0 0
      %1335 = vmatprep.subr.bf16.mxu0 0
      %1336 = vmatpush1.bf16.msra.mxu0 0
      %1337 = vmatprep.subr.bf16.mxu0 0
      %1338 = vmatpush1.bf16.msra.mxu0 %v1321
      %1339 = vmatprep.subr.bf16.mxu0 0
      %1340 = vmatpush2.bf16.msra.mxu0 0
      %1341 = vmatprep.subr.bf16.mxu0 0
      %1342 = vmatpush2.bf16.msra.mxu0 0
      %1343 = vmatprep.subr.bf16.mxu0 0
      %1344 = vmatpush2.bf16.msra.mxu0 0
      %1345 = vmatprep.subr.bf16.mxu0 0
      %1346 = vmatpush2.bf16.msra.mxu0 0
      %1347 = vmatprep.subr.bf16.mxu0 0
      %1348 = vmatpush2.bf16.msra.mxu0 0
      %1349 = vmatprep.subr.bf16.mxu0 0
      %1350 = vmatpush2.bf16.msra.mxu0 0
      %1351 = vmatprep.subr.bf16.mxu0 0
      %1352 = vmatpush2.bf16.msra.mxu0 0
      %1353 = vmatprep.subr.bf16.mxu0 0
      %1354 = vmatpush2.bf16.msra.mxu0 0
      %1355 = vmatprep.mubr.bf16.mxu0 0
      %1356 = vmatmul.mubr.bf16.gmra.mxu0 %v1318
      %v1357 = vpop.f32.mrf.mxu0
      %v1358 = vadd.f32 0.0, %v1357
      %v1359 = vpop.f32.mrf.mxu0
      %v1360 = vpop.f32.mrf.mxu0
      %v1361 = vpop.f32.mrf.mxu0
      %1362 = vdwg.mxu0
      %v1363 = vadd.f32 %v1309, %v1358
      %s1364 = scalar_lea.vmem %s4, 14
      %v1365 = vld [vmem:[%s1364] sm:$0x3]
      %1366 = vrot.lane.b32.xlu0 %v973, 96
      %v1367 = vpop.permute.xlu0 %1366
      %1368 = vrot.lane.b32.xlu0 %v974, 96
      %v1369 = vpop.permute.xlu0 %1368
      %v1370 = vsel %vm767, %v1367, %v1369
      %v1372 = vsel %vm423, %v1365, 0
      %v1375 = vsel %vm427, %v1370, 0
      %1377 = vmatprep.subr.bf16.mxu0 0
      %1378 = vmatpush1.bf16.msra.mxu0 0
      %1379 = vmatprep.subr.bf16.mxu0 0
      %1380 = vmatpush1.bf16.msra.mxu0 0
      %1381 = vmatprep.subr.bf16.mxu0 0
      %1382 = vmatpush1.bf16.msra.mxu0 0
      %1383 = vmatprep.subr.bf16.mxu0 0
      %1384 = vmatpush1.bf16.msra.mxu0 0
      %1385 = vmatprep.subr.bf16.mxu0 0
      %1386 = vmatpush1.bf16.msra.mxu0 0
      %1387 = vmatprep.subr.bf16.mxu0 0
      %1388 = vmatpush1.bf16.msra.mxu0 0
      %1389 = vmatprep.subr.bf16.mxu0 0
      %1390 = vmatpush1.bf16.msra.mxu0 0
      %1391 = vmatprep.subr.bf16.mxu0 0
      %1392 = vmatpush1.bf16.msra.mxu0 %v1375
      %1393 = vmatprep.subr.bf16.mxu0 0
      %1394 = vmatpush2.bf16.msra.mxu0 0
      %1395 = vmatprep.subr.bf16.mxu0 0
      %1396 = vmatpush2.bf16.msra.mxu0 0
      %1397 = vmatprep.subr.bf16.mxu0 0
      %1398 = vmatpush2.bf16.msra.mxu0 0
      %1399 = vmatprep.subr.bf16.mxu0 0
      %1400 = vmatpush2.bf16.msra.mxu0 0
      %1401 = vmatprep.subr.bf16.mxu0 0
      %1402 = vmatpush2.bf16.msra.mxu0 0
      %1403 = vmatprep.subr.bf16.mxu0 0
      %1404 = vmatpush2.bf16.msra.mxu0 0
      %1405 = vmatprep.subr.bf16.mxu0 0
      %1406 = vmatpush2.bf16.msra.mxu0 0
      %1407 = vmatprep.subr.bf16.mxu0 0
      %1408 = vmatpush2.bf16.msra.mxu0 0
      %1409 = vmatprep.mubr.bf16.mxu0 0
      %1410 = vmatmul.mubr.bf16.gmra.mxu0 %v1372
      %v1411 = vpop.f32.mrf.mxu0
      %v1412 = vadd.f32 0.0, %v1411
      %v1413 = vpop.f32.mrf.mxu0
      %v1414 = vpop.f32.mrf.mxu0
      %v1415 = vpop.f32.mrf.mxu0
      %1416 = vdwg.mxu0
      %v1417 = vadd.f32 %v1363, %v1412
      %s1418 = scalar_lea.vmem %s4, 16
      %v1419 = vld [vmem:[%s1418] sm:$0x3]
      %1420 = vrot.lane.b32.xlu0 %v998, 96
      %v1421 = vpop.permute.xlu0 %1420
      %1422 = vrot.lane.b32.xlu0 %v999, 96
      %v1423 = vpop.permute.xlu0 %1422
      %v1424 = vsel %vm767, %v1421, %v1423
      %v1426 = vsel %vm423, %v1419, 0
      %v1429 = vsel %vm427, %v1424, 0
      %1431 = vmatprep.subr.bf16.mxu0 0
      %1432 = vmatpush1.bf16.msra.mxu0 0
      %1433 = vmatprep.subr.bf16.mxu0 0
      %1434 = vmatpush1.bf16.msra.mxu0 0
      %1435 = vmatprep.subr.bf16.mxu0 0
      %1436 = vmatpush1.bf16.msra.mxu0 0
      %1437 = vmatprep.subr.bf16.mxu0 0
      %1438 = vmatpush1.bf16.msra.mxu0 0
      %1439 = vmatprep.subr.bf16.mxu0 0
      %1440 = vmatpush1.bf16.msra.mxu0 0
      %1441 = vmatprep.subr.bf16.mxu0 0
      %1442 = vmatpush1.bf16.msra.mxu0 0
      %1443 = vmatprep.subr.bf16.mxu0 0
      %1444 = vmatpush1.bf16.msra.mxu0 0
      %1445 = vmatprep.subr.bf16.mxu0 0
      %1446 = vmatpush1.bf16.msra.mxu0 %v1429
      %1447 = vmatprep.subr.bf16.mxu0 0
      %1448 = vmatpush2.bf16.msra.mxu0 0
      %1449 = vmatprep.subr.bf16.mxu0 0
      %1450 = vmatpush2.bf16.msra.mxu0 0
      %1451 = vmatprep.subr.bf16.mxu0 0
      %1452 = vmatpush2.bf16.msra.mxu0 0
      %1453 = vmatprep.subr.bf16.mxu0 0
      %1454 = vmatpush2.bf16.msra.mxu0 0
      %1455 = vmatprep.subr.bf16.mxu0 0
      %1456 = vmatpush2.bf16.msra.mxu0 0
      %1457 = vmatprep.subr.bf16.mxu0 0
      %1458 = vmatpush2.bf16.msra.mxu0 0
      %1459 = vmatprep.subr.bf16.mxu0 0
      %1460 = vmatpush2.bf16.msra.mxu0 0
      %1461 = vmatprep.subr.bf16.mxu0 0
      %1462 = vmatpush2.bf16.msra.mxu0 0
      %1463 = vmatprep.mubr.bf16.mxu0 0
      %1464 = vmatmul.mubr.bf16.gmra.mxu0 %v1426
      %v1465 = vpop.f32.mrf.mxu0
      %v1466 = vadd.f32 0.0, %v1465
      %v1467 = vpop.f32.mrf.mxu0
      %v1468 = vpop.f32.mrf.mxu0
      %v1469 = vpop.f32.mrf.mxu0
      %1470 = vdwg.mxu0
      %v1471 = vadd.f32 %v1417, %v1466
      %v1472 = vld [vmem:[%s5] sm:$0xf]
      %1474 = vset.pattern.permute.xlu0 0
      %1475 = vperm.xlu0 %1474, %v1472
      %v1476 = vpop.permute.xlu0 %1475
      %v1478 = vadd.f32 %v1471, %v1476
      %v1479 = vadd.f32 %v1478, %v317
      %1480 = vst [vmem:[%s313] sm:$0xf] %v1479
      %p1481 = scmp.lt.s32.totalorder %s21, 1
      %s1482 = scalar_select %p1481, %s21, 1
      %p1483 = scmp.lt.s32.totalorder %s22, 1
      %s1484 = scalar_select %p1483, %s22, 1
      %s1485 = smul.addr %s1482, 2
      %s1486 = sadd.s32 %s1484, %s1485
      %s1487 = smul.addr %s1486, 4
      %s1488 = scalar_lea.vmem %s6, %s1487
      // Predicated region
      $region45: #{residual_block_nobn.1} parent=43 // pred_check
        %p1489 = pneg %p189
      $region46: #{residual_block_nobn.1} parent=43 // pred_check_branch
        %1491 = sbr.rel (%p1489) target = $region48
      $region47: #{residual_block_nobn.1} parent=43 // pred_region
        _
      $region48: #{residual_block_nobn.1} parent=43 // pred_fallthru
        _
    $region44: #{residual_block_nobn.1} parent=5 // pred_fallthru
      _
    %p1492 = scmp.le.s32.totalorder 2, %s12
    // Predicated region
    $region49: #{residual_block_nobn.1} parent=5 // pred_check
      %p1493 = pneg %p1492
    $region50: #{residual_block_nobn.1} parent=5 // pred_check_branch
      %1495 = sbr.rel (%p1493) target = $region52
    $region51: #{residual_block_nobn.1} parent=5 // pred_region
      %s1496 = ssub.s32 %s12, 2
      // Predicated region
      $region53: #{residual_block_nobn.1} parent=51 // pred_check
        %p1497 = pneg %p195
      $region54: #{residual_block_nobn.1} parent=51 // pred_check_branch
        %1499 = sbr.rel (%p1497) target = $region56
      $region55: #{residual_block_nobn.1} parent=51 // pred_region
        %p1500 = scmp.lt.s32.totalorder %s23, 1
        %s1501 = scalar_select %p1500, %s23, 1
        %p1502 = scmp.lt.s32.totalorder %s24, 1
        %s1503 = scalar_select %p1502, %s24, 1
        %s1504 = smul.addr %s1501, 2
        %s1505 = sadd.s32 %s1503, %s1504
        %s1506 = smul.addr %s1505, 4
        %s1507 = scalar_lea.vmem %s6, %s1506
      $region56: #{residual_block_nobn.1} parent=51 // pred_fallthru
        _
    $region52: #{residual_block_nobn.1} parent=5 // pred_fallthru
      _
  $region6: #{residual_block_nobn.1} parent=0 // loop_footer
    %s16 = sadd.s32 1, %s12
  $region7: #{residual_block_nobn.1} parent=0 // loop_footer_branch
    %11 = sbr.rel target = $region3
  $region8: #{residual_block_nobn.1} parent=0 // loop_exit
    _

</llo_original>
